<compile_context>
chip_gen: v5e
topology: v5e:2x2
jax: 0.10.0
libtpu: 0.0.40
codegen_flags: <defaults>
</compile_context>

<pallas_src>
import functools

import jax
import jax.numpy as jnp
from jax.experimental import pallas as pl
from jax.experimental.pallas import tpu as pltpu


# ---------------------------------------------------------------------------
# Fused Pallas kernel: conv1+conv2 -> proj(+pos bias) -> residual FF -> maxpool -> head
# One grid step == one critic.
# ---------------------------------------------------------------------------

def _fused_critic_kernel(*refs, n_modules, n_linears, batch, p_pad, n_kernels):
    (shift_ref, w1_ref, b1_ref, w2_ref, b2_ref, projw_ref, posb_ref) = refs[:7]
    pff_refs = refs[7:7 + 2 * n_linears]
    headw_ref = refs[7 + 2 * n_linears]
    headb_ref = refs[8 + 2 * n_linears]
    o_ref = refs[9 + 2 * n_linears]

    M = batch * p_pad          # rows of the per-pixel activation slab (row = b*p_pad + p)
    K = n_kernels
    bf16 = jnp.bfloat16

    # --- conv1 (2x2, ReLU) for all 4 conv2 taps in ONE MXU matmul: the 4 taps' shifted input
    #     windows are stacked along rows and conv1's 4 taps concatenated along the contraction.
    y1 = jnp.dot(shift_ref[0].astype(bf16), w1_ref[0],
                 preferred_element_type=jnp.float32)                    # (4*M, K)
    y1 = jnp.maximum(y1 + b1_ref[0], 0.0)

    # --- conv2 (2x2, ReLU): accumulate the 4 taps via sublane-aligned static slices of y1.
    y2 = jnp.dot(y1[0:M].astype(bf16), w2_ref[0, 0], preferred_element_type=jnp.float32)
    for t in range(1, 4):
        y2 = y2 + jnp.dot(y1[t * M:(t + 1) * M].astype(bf16), w2_ref[0, t],
                          preferred_element_type=jnp.float32)
    y2 = jnp.maximum(y2 + b2_ref[0], 0.0)                               # (M, K)

    # --- projection; positional encoding + proj bias pre-folded into posb (per pixel only,
    #     broadcast over the batch blocks here instead of tiling it in HBM).
    x = jnp.dot(y2.astype(bf16), projw_ref[0], preferred_element_type=jnp.float32)
    x = x + jnp.concatenate([posb_ref[0]] * batch, axis=0)              # (M, F) f32

    # --- residual position-wise feed-forward modules (weights VMEM-resident; bf16 on the MXU,
    #     bias / ReLU / residual math kept in f32).
    # TODO(synk): switch to lax.fori_loop(..., unroll=True) with dynamic module indexing if
    #             n_control_modules / n_linears grow enough to pressure the 64 vregs.
    for m in range(n_modules):
        h = x
        for i in range(n_linears - 1):
            h = jnp.maximum(
                jnp.dot(h.astype(bf16), pff_refs[2 * i][0, m],
                        preferred_element_type=jnp.float32) + pff_refs[2 * i + 1][0, m], 0.0)
        x = (jnp.dot(h.astype(bf16), pff_refs[2 * (n_linears - 1)][0, m],
                     preferred_element_type=jnp.float32)
             + pff_refs[2 * (n_linears - 1) + 1][0, m] + x)

    # --- feature-wise max-pool over pixels: batch-aligned static sublane slices (p_pad is a
    #     multiple of 8; padded rows duplicate a real pixel, so they never change the max).
    feats = jnp.concatenate(
        [jnp.max(x[b * p_pad:(b + 1) * p_pad], axis=0, keepdims=True)
         for b in range(batch)], axis=0)                                # (batch, F)

    # --- critic head: Linear(n_features, 1)
    v = jnp.dot(feats.astype(bf16), headw_ref[0],
                preferred_element_type=jnp.float32) + headb_ref[0]
    o_ref[0] = v.astype(o_ref.dtype)


def _block_spec_per_critic(shape):
    # Block = full array for one critic; grid axis 0 selects the critic.
    nrest = len(shape) - 1
    return pl.BlockSpec((1,) + tuple(shape[1:]),
                        lambda c, _n=nrest: (c,) + (0,) * _n)


def _critic_dim_semantics(n_critics):
    """Semantics for the critic grid axis: split across v7x's two TensorCores; on single-TC
    v5e/v6e the grid is a plain serial loop, so ARBITRARY is accurate."""
    try:
        kind = jax.devices()[0].device_kind.lower()
    except Exception:
        kind = ""
    if n_critics == 2 and ("v7" in kind or "tpu7" in kind):
        return (pltpu.CORE_PARALLEL,)
    return (pltpu.ARBITRARY,)


# ---------------------------------------------------------------------------
# One-time parameter layout prep (review item 1)
# ---------------------------------------------------------------------------

def prepare_critic_params(params, cfg, H, W, twin=True):
    """Pure function of params (+ spatial size): stack the twin critics, convert conv weights
    to MXU matmul layout, fold the positional encoding + projection bias into a per-pixel bias
    slab, stack the FF-module weights, and cast matmul weights to bf16.  Call once, reuse."""
    per = [params["net1"], params["net2"]] if twin else [params["net"]]
    stacked = jax.tree_util.tree_map(lambda *xs: jnp.stack(xs, axis=0), *per)
    cnet = stacked["cnet"]
    headw, headb = stacked["lin"]
    n_critics = headw.shape[0]

    C, n_dim, K = cfg["in_channels"], cfg["n_dim"], cfg["n_kernels"]
    nm, nl = cfg["n_control_modules"], cfg["n_linears"]
    Cin = C * n_dim
    H2, W2 = H - 2, W - 2
    P = H2 * W2
    P_pad = ((P + 7) // 8) * 8          # sublane-align the pixel axis (review item 4)
    bf16 = jnp.bfloat16

    # conv taps as (in, out) matmul matrices; conv1's 4 taps concatenated along the contraction
    # dim so the whole conv1 becomes one MXU dot in the kernel (review item 3).
    w1cat = jnp.transpose(cnet["conv1_w"], (0, 3, 4, 2, 1)).reshape(n_critics, 4 * Cin, K)
    w2m = jnp.transpose(cnet["conv2_w"], (0, 3, 4, 2, 1)).reshape(n_critics, 4, K, K)

    # fold positional encoding + projection bias into a per-pixel (NOT per-batch-row) bias slab;
    # pad pixels duplicate the last real pixel so the in-kernel max over P_pad rows is exact.
    projw_main = cnet["proj_w"][:, :K, :]
    projw_pos = cnet["proj_w"][:, K:, :]
    ys = jnp.linspace(-1.0, 1.0, H2)
    xs = jnp.linspace(-1.0, 1.0, W2)
    yy, xx = jnp.meshgrid(ys, xs, indexing="ij")
    pos = jnp.stack([yy, xx], axis=-1).reshape(P, 2).astype(jnp.float32)
    posb = jnp.einsum("pc,ncf->npf", pos, projw_pos) + cnet["proj_b"][:, None, :]
    posb = jnp.pad(posb, ((0, 0), (0, P_pad - P), (0, 0)), mode="edge")  # (Nc, P_pad, F)

    prep = {
        "embed": cnet["embed"],                                     # (Nc, vocab, n_dim) f32
        "w1cat": w1cat.astype(bf16),                                # (Nc, 4*Cin, K)
        "b1": cnet["conv1_b"].reshape(n_critics, 1, K),             # f32
        "w2": w2m.astype(bf16),                                     # (Nc, 4, K, K)
        "b2": cnet["conv2_b"].reshape(n_critics, 1, K),             # f32
        "projw": projw_main.astype(bf16),                           # (Nc, K, F)
        "posb": posb,                                               # (Nc, P_pad, F) f32
        "pff_w": [jnp.stack([cnet["pff"][m][i][0] for m in range(nm)], axis=1).astype(bf16)
                  for i in range(nl)],
        "pff_b": [jnp.stack([cnet["pff"][m][i][1] for m in range(nm)], axis=1)[:, :, None, :]
                  for i in range(nl)],
        "headw": headw.astype(bf16),                                # (Nc, F, 1)
        "headb": headb.reshape(n_critics, 1, 1),                    # f32
    }
    return prep


# ---------------------------------------------------------------------------
# Forward pass (per-call glue: embedding gather + window build + one pallas_call)
# ---------------------------------------------------------------------------

def _fused_twin_forward(prep, state, cfg):
    B, C, H, W = state.shape
    n_dim, K = cfg["n_dim"], cfg["n_kernels"]
    nm, nl = cfg["n_control_modules"], cfg["n_linears"]
    Cin = C * n_dim
    H2, W2 = H - 2, W - 2
    P = H2 * W2
    n_critics, P_pad, _F = prep["posb"].shape
    assert P_pad == ((P + 7) // 8) * 8, "prepared params were built for a different H, W"
    M = B * P_pad

    # --- state-dependent XLA glue only ----------------------------------------------------
    # TODO(synk): the embedding lookup is a data-dependent gather; kept in plain JAX glue.
    emb = jnp.take(prep["embed"], state, axis=1)                    # (Nc, B, C, H, W, n_dim)
    emb = jnp.transpose(emb, (0, 1, 3, 4, 2, 5)).reshape(n_critics, B, H, W, Cin)
    taps = []
    for kh in (0, 1):
        for kw in (0, 1):
            win = jnp.concatenate(
                [emb[:, :, kh + dh:kh + dh + H2, kw + dw:kw + dw + W2, :]
                 for dh in (0, 1) for dw in (0, 1)], axis=-1)       # (Nc, B, H2, W2, 4*Cin)
            win = win.reshape(n_critics, B, P, 4 * Cin)
            win = jnp.pad(win, ((0, 0), (0, 0), (0, P_pad - P), (0, 0)), mode="edge")
            taps.append(win.reshape(n_critics, M, 4 * Cin))
    shifted = jnp.concatenate(taps, axis=1)                         # (Nc, 4*M, 4*Cin)

    inputs = [shifted, prep["w1cat"], prep["b1"], prep["w2"], prep["b2"],
              prep["projw"], prep["posb"]]
    for i in range(nl):
        inputs += [prep["pff_w"][i], prep["pff_b"][i]]
    inputs += [prep["headw"], prep["headb"]]

    kernel = functools.partial(_fused_critic_kernel, n_modules=nm, n_linears=nl,
                               batch=B, p_pad=P_pad, n_kernels=K)
    out = pl.pallas_call(
        kernel,
        out_shape=jax.ShapeDtypeStruct((n_critics, B, 1), jnp.float32),
        grid=(n_critics,),
        in_specs=[_block_spec_per_critic(a.shape) for a in inputs],
        out_specs=pl.BlockSpec((1, B, 1), lambda c: (c, 0, 0)),
        compiler_params=pltpu.CompilerParams(
            dimension_semantics=_critic_dim_semantics(n_critics)),
    )(*inputs)
    return out                                                      # (Nc, B, 1)


def box_world_critic_forward(prepared, state, cfg, twin=True, target=False):
    """Forward pass from PREPARED params (see prepare_critic_params)."""
    out = _fused_twin_forward(prepared, state, cfg)                 # (Nc, B, 1)
    if twin:
        v1, v2 = out[0], out[1]
        if target:
            return jnp.minimum(v1, v2)
        return v1, v2
    return out[0]


# ---------------------------------------------------------------------------
# Parameter init (deterministic; PyTorch-like fan-in uniform / N(0,1) embedding)
# ---------------------------------------------------------------------------

def _init_linear(key, fan_in, fan_out):
    k1, k2 = jax.random.split(key)
    bound = float(fan_in) ** -0.5
    w = jax.random.uniform(k1, (fan_in, fan_out), jnp.float32, -bound, bound)
    b = jax.random.uniform(k2, (fan_out,), jnp.float32, -bound, bound)
    return w, b


def init_box_world_net_params(key, in_channels, n_kernels, vocab_size, n_dim,
                              n_features, hidden_dim, n_control_modules, n_linears):
    keys = jax.random.split(key, 4 + n_control_modules)
    p = {}
    p["embed"] = jax.random.normal(keys[0], (vocab_size, n_dim), jnp.float32)

    c_in = in_channels * n_dim
    k1a, k1b = jax.random.split(keys[1])
    b1 = float(c_in * 4) ** -0.5
    p["conv1_w"] = jax.random.uniform(k1a, (n_kernels, c_in, 2, 2), jnp.float32, -b1, b1)
    p["conv1_b"] = jax.random.uniform(k1b, (n_kernels,), jnp.float32, -b1, b1)

    k2a, k2b = jax.random.split(keys[2])
    b2 = float(n_kernels * 4) ** -0.5
    p["conv2_w"] = jax.random.uniform(k2a, (n_kernels, n_kernels, 2, 2), jnp.float32, -b2, b2)
    p["conv2_b"] = jax.random.uniform(k2b, (n_kernels,), jnp.float32, -b2, b2)

    p["proj_w"], p["proj_b"] = _init_linear(keys[3], n_kernels + 2, n_features)

    dims = [n_features] + [hidden_dim] * (n_linears - 1) + [n_features]
    pff = []
    for m in range(n_control_modules):
        lkeys = jax.random.split(keys[4 + m], n_linears)
        pff.append([_init_linear(lkeys[i], dims[i], dims[i + 1]) for i in range(n_linears)])
    p["pff"] = pff
    return p


def init_box_world_critic_params(key, twin=True, **cfg):
    def init_basic(k):
        k1, k2 = jax.random.split(k)
        return {
            "cnet": init_box_world_net_params(k1, **cfg),
            "lin": _init_linear(k2, cfg["n_features"], 1),
        }
    if twin:
        k1, k2 = jax.random.split(key)
        return {"net1": init_basic(k1), "net2": init_basic(k2)}
    return {"net": init_basic(key)}


# ---------------------------------------------------------------------------
# Pure-JAX reference of one basic critic (numeric self-check only)
# ---------------------------------------------------------------------------

def _reference_basic_critic(p, state, cfg, dot_dtype=jnp.float32):
    def mm(a, b):
        return jnp.dot(a.astype(dot_dtype), b.astype(dot_dtype),
                       preferred_element_type=jnp.float32)

    B, C, H, W = state.shape
    n_dim = cfg["n_dim"]
    cn = p["cnet"]
    emb = jnp.take(cn["embed"], state, axis=0)                      # (B, C, H, W, n_dim)
    x = jnp.transpose(emb, (0, 2, 3, 1, 4)).reshape(B, H, W, C * n_dim)

    def conv2x2_relu(x, w, b):
        Bx, Hx, Wx, Cx = x.shape
        cols = [x[:, kh:Hx - 1 + kh, kw:Wx - 1 + kw, :] for kh in range(2) for kw in range(2)]
        patches = jnp.stack(cols, axis=-1).reshape(Bx, Hx - 1, Wx - 1, Cx * 4)
        O = w.shape[0]
        y = mm(patches.reshape(-1, Cx * 4), w.reshape(O, Cx * 4).T) + b
        return jnp.maximum(y, 0.0).reshape(Bx, Hx - 1, Wx - 1, O)

    x = conv2x2_relu(x, cn["conv1_w"], cn["conv1_b"])
    x = conv2x2_relu(x, cn["conv2_w"], cn["conv2_b"])
    Bh, Hh, Wh, K = x.shape
    ys = jnp.linspace(-1.0, 1.0, Hh)
    xs = jnp.linspace(-1.0, 1.0, Wh)
    yy, xx = jnp.meshgrid(ys, xs, indexing="ij")
    pos = jnp.broadcast_to(jnp.stack([yy, xx], axis=-1), (Bh, Hh, Wh, 2)).astype(jnp.float32)
    x = jnp.concatenate([x, pos], axis=-1).reshape(Bh * Hh * Wh, K + 2)
    x = mm(x, cn["proj_w"]) + cn["proj_b"]
    for module in cn["pff"]:
        h = x
        for (w, b) in module[:-1]:
            h = jnp.maximum(mm(h, w) + b, 0.0)
        wl, bl = module[-1]
        x = mm(h, wl) + bl + x
    feats = x.reshape(Bh, Hh * Wh, -1).max(axis=1)
    lw, lb = p["lin"]
    return mm(feats, lw) + lb


# ---------------------------------------------------------------------------

if __name__ == "__main__":
    cfg = dict(
        in_channels=1,
        n_kernels=24,
        vocab_size=117,
        n_dim=3,
        n_features=128,
        hidden_dim=64,
        n_control_modules=2,
        n_linears=2,
    )
    key = jax.random.PRNGKey(0)
    pkey, skey = jax.random.split(key)

    params = init_box_world_critic_params(pkey, twin=True, **cfg)

    B, H, W = 2, 8, 8
    state = jax.random.randint(
        skey, (B, cfg["in_channels"], H, W), 0, cfg["vocab_size"], dtype=jnp.int32
    )

    # One-time parameter layout prep (hoisted out of the per-step forward; review item 1).
    prepared = prepare_critic_params(params, cfg, H, W, twin=True)
    prepared = jax.block_until_ready(prepared)

    fwd = jax.jit(lambda pp, s: box_world_critic_forward(pp, s, cfg, twin=True, target=False))
    v1, v2 = fwd(prepared, state)
    jax.block_until_ready((v1, v2))
    assert v1.shape == (B, 1) and v2.shape == (B, 1)
    assert v1.dtype == jnp.float32 and v2.dtype == jnp.float32

    # Numeric self-checks:
    #  (a) apples-to-apples: reference with bf16 matmul operands (same regime as the kernel)
    r1b = _reference_basic_critic(params["net1"], state, cfg, dot_dtype=jnp.bfloat16)
    r2b = _reference_basic_critic(params["net2"], state, cfg, dot_dtype=jnp.bfloat16)
    assert bool(jnp.allclose(v1, r1b, rtol=2e-2, atol=2e-2))
    assert bool(jnp.allclose(v2, r2b, rtol=2e-2, atol=2e-2))
    #  (b) spec fidelity: pure-f32 reference, loose tol to cover bf16 operand quantization.
    r1 = _reference_basic_critic(params["net1"], state, cfg)
    r2 = _reference_basic_critic(params["net2"], state, cfg)
    assert bool(jnp.allclose(v1, r1, rtol=1e-1, atol=1e-1))
    assert bool(jnp.allclose(v2, r2, rtol=1e-1, atol=1e-1))

    # target=True path (min of the two critics)
    fwd_t = jax.jit(lambda pp, s: box_world_critic_forward(pp, s, cfg, twin=True, target=True))
    v_min = fwd_t(prepared, state)
    jax.block_until_ready(v_min)
    assert v_min.shape == (B, 1)

    print("KERNEL_OK")
</pallas_src>

<mosaic_0001>
module attributes {stable_mosaic.version = 11 : i64} {
  func.func @_fused_critic_kernel(%arg0: i32, %arg1: memref<1x320x12xf32, #tpu.memory_space<vmem>>, %arg2: memref<1x12x24xbf16, #tpu.memory_space<vmem>>, %arg3: memref<1x1x24xf32, #tpu.memory_space<vmem>>, %arg4: memref<1x4x24x24xbf16, #tpu.memory_space<vmem>>, %arg5: memref<1x1x24xf32, #tpu.memory_space<vmem>>, %arg6: memref<1x24x128xbf16, #tpu.memory_space<vmem>>, %arg7: memref<1x40x128xf32, #tpu.memory_space<vmem>>, %arg8: memref<1x2x128x64xbf16, #tpu.memory_space<vmem>>, %arg9: memref<1x2x1x64xf32, #tpu.memory_space<vmem>>, %arg10: memref<1x2x64x128xbf16, #tpu.memory_space<vmem>>, %arg11: memref<1x2x1x128xf32, #tpu.memory_space<vmem>>, %arg12: memref<1x128x1xbf16, #tpu.memory_space<vmem>>, %arg13: memref<1x1x1xf32, #tpu.memory_space<vmem>>, %arg14: memref<1x2x1xf32, #tpu.memory_space<vmem>>) attributes {dimension_semantics = [#tpu.dimension_semantics<arbitrary>], iteration_bounds = array<i64: 2>, scalar_prefetch = 0 : i64, scratch_operands = 0 : i64, tpu.core_type = #tpu.core_type<tc>, window_params = [{transform_indices = @transform_0, window_bounds = array<i64: 1, 320, 12>}, {transform_indices = @transform_1, window_bounds = array<i64: 1, 12, 24>}, {transform_indices = @transform_2, window_bounds = array<i64: 1, 1, 24>}, {transform_indices = @transform_3, window_bounds = array<i64: 1, 4, 24, 24>}, {transform_indices = @transform_4, window_bounds = array<i64: 1, 1, 24>}, {transform_indices = @transform_5, window_bounds = array<i64: 1, 24, 128>}, {transform_indices = @transform_6, window_bounds = array<i64: 1, 40, 128>}, {transform_indices = @transform_7, window_bounds = array<i64: 1, 2, 128, 64>}, {transform_indices = @transform_8, window_bounds = array<i64: 1, 2, 1, 64>}, {transform_indices = @transform_9, window_bounds = array<i64: 1, 2, 64, 128>}, {transform_indices = @transform_10, window_bounds = array<i64: 1, 2, 1, 128>}, {transform_indices = @transform_11, window_bounds = array<i64: 1, 128, 1>}, {transform_indices = @transform_12, window_bounds = array<i64: 1, 1, 1>}, {transform_indices = @transform_13, window_bounds = array<i64: 1, 2, 1>}]} {
    %c0 = arith.constant 0 : index
    %c0_0 = arith.constant 0 : index
    %c0_1 = arith.constant 0 : index
    %0 = vector.load %arg1[%c0, %c0_0, %c0_1] : memref<1x320x12xf32, #tpu.memory_space<vmem>>, vector<1x320x12xf32>
    %1 = vector.shape_cast %0 : vector<1x320x12xf32> to vector<320x12xf32>
    %2 = arith.truncf %1 : vector<320x12xf32> to vector<320x12xbf16>
    %c0_2 = arith.constant 0 : index
    %c0_3 = arith.constant 0 : index
    %c0_4 = arith.constant 0 : index
    %3 = vector.load %arg2[%c0_2, %c0_3, %c0_4] : memref<1x12x24xbf16, #tpu.memory_space<vmem>>, vector<1x12x24xbf16>
    %4 = vector.shape_cast %3 : vector<1x12x24xbf16> to vector<12x24xbf16>
    %cst = arith.constant dense<0.000000e+00> : vector<320x24xf32>
    %5 = tpu.matmul %2, %4, %cst {dimension_numbers = #tpu.dot_dimension_numbers<[1], [0], [0], [1], [0, 0, 1, 1], [], []>} : vector<320x12xbf16>, vector<12x24xbf16>, vector<320x24xf32> -> vector<320x24xf32>
    %c0_5 = arith.constant 0 : index
    %c0_6 = arith.constant 0 : index
    %c0_7 = arith.constant 0 : index
    %6 = vector.load %arg3[%c0_5, %c0_6, %c0_7] : memref<1x1x24xf32, #tpu.memory_space<vmem>>, vector<1x1x24xf32>
    %7 = vector.shape_cast %6 : vector<1x1x24xf32> to vector<1x24xf32>
    %8 = vector.broadcast %7 : vector<1x24xf32> to vector<320x24xf32>
    %9 = arith.addf %5, %8 : vector<320x24xf32>
    %cst_8 = arith.constant 0.000000e+00 : f32
    %10 = vector.broadcast %cst_8 : f32 to vector<320x24xf32>
    %11 = arith.maximumf %9, %10 : vector<320x24xf32>
    %12 = vector.extract_strided_slice %11 {offsets = [0, 0], sizes = [80, 24], strides = [1, 1]} : vector<320x24xf32> to vector<80x24xf32>
    %13 = arith.truncf %12 : vector<80x24xf32> to vector<80x24xbf16>
    %c0_9 = arith.constant 0 : index
    %c0_10 = arith.constant 0 : index
    %c0_11 = arith.constant 0 : index
    %c0_12 = arith.constant 0 : index
    %14 = vector.load %arg4[%c0_9, %c0_10, %c0_11, %c0_12] : memref<1x4x24x24xbf16, #tpu.memory_space<vmem>>, vector<1x1x24x24xbf16>
    %15 = vector.shape_cast %14 : vector<1x1x24x24xbf16> to vector<24x24xbf16>
    %cst_13 = arith.constant dense<0.000000e+00> : vector<80x24xf32>
    %16 = tpu.matmul %13, %15, %cst_13 {dimension_numbers = #tpu.dot_dimension_numbers<[1], [0], [0], [1], [0, 0, 1, 1], [], []>} : vector<80x24xbf16>, vector<24x24xbf16>, vector<80x24xf32> -> vector<80x24xf32>
    %17 = vector.extract_strided_slice %11 {offsets = [80, 0], sizes = [80, 24], strides = [1, 1]} : vector<320x24xf32> to vector<80x24xf32>
    %18 = arith.truncf %17 : vector<80x24xf32> to vector<80x24xbf16>
    %c0_14 = arith.constant 0 : index
    %c1 = arith.constant 1 : index
    %c0_15 = arith.constant 0 : index
    %c0_16 = arith.constant 0 : index
    %19 = vector.load %arg4[%c0_14, %c1, %c0_15, %c0_16] : memref<1x4x24x24xbf16, #tpu.memory_space<vmem>>, vector<1x1x24x24xbf16>
    %20 = vector.shape_cast %19 : vector<1x1x24x24xbf16> to vector<24x24xbf16>
    %cst_17 = arith.constant dense<0.000000e+00> : vector<80x24xf32>
    %21 = tpu.matmul %18, %20, %cst_17 {dimension_numbers = #tpu.dot_dimension_numbers<[1], [0], [0], [1], [0, 0, 1, 1], [], []>} : vector<80x24xbf16>, vector<24x24xbf16>, vector<80x24xf32> -> vector<80x24xf32>
    %22 = arith.addf %16, %21 : vector<80x24xf32>
    %23 = vector.extract_strided_slice %11 {offsets = [160, 0], sizes = [80, 24], strides = [1, 1]} : vector<320x24xf32> to vector<80x24xf32>
    %24 = arith.truncf %23 : vector<80x24xf32> to vector<80x24xbf16>
    %c0_18 = arith.constant 0 : index
    %c2 = arith.constant 2 : index
    %c0_19 = arith.constant 0 : index
    %c0_20 = arith.constant 0 : index
    %25 = vector.load %arg4[%c0_18, %c2, %c0_19, %c0_20] : memref<1x4x24x24xbf16, #tpu.memory_space<vmem>>, vector<1x1x24x24xbf16>
    %26 = vector.shape_cast %25 : vector<1x1x24x24xbf16> to vector<24x24xbf16>
    %cst_21 = arith.constant dense<0.000000e+00> : vector<80x24xf32>
    %27 = tpu.matmul %24, %26, %cst_21 {dimension_numbers = #tpu.dot_dimension_numbers<[1], [0], [0], [1], [0, 0, 1, 1], [], []>} : vector<80x24xbf16>, vector<24x24xbf16>, vector<80x24xf32> -> vector<80x24xf32>
    %28 = arith.addf %22, %27 : vector<80x24xf32>
    %29 = vector.extract_strided_slice %11 {offsets = [240, 0], sizes = [80, 24], strides = [1, 1]} : vector<320x24xf32> to vector<80x24xf32>
    %30 = arith.truncf %29 : vector<80x24xf32> to vector<80x24xbf16>
    %c0_22 = arith.constant 0 : index
    %c3 = arith.constant 3 : index
    %c0_23 = arith.constant 0 : index
    %c0_24 = arith.constant 0 : index
    %31 = vector.load %arg4[%c0_22, %c3, %c0_23, %c0_24] : memref<1x4x24x24xbf16, #tpu.memory_space<vmem>>, vector<1x1x24x24xbf16>
    %32 = vector.shape_cast %31 : vector<1x1x24x24xbf16> to vector<24x24xbf16>
    %cst_25 = arith.constant dense<0.000000e+00> : vector<80x24xf32>
    %33 = tpu.matmul %30, %32, %cst_25 {dimension_numbers = #tpu.dot_dimension_numbers<[1], [0], [0], [1], [0, 0, 1, 1], [], []>} : vector<80x24xbf16>, vector<24x24xbf16>, vector<80x24xf32> -> vector<80x24xf32>
    %34 = arith.addf %28, %33 : vector<80x24xf32>
    %c0_26 = arith.constant 0 : index
    %c0_27 = arith.constant 0 : index
    %c0_28 = arith.constant 0 : index
    %35 = vector.load %arg5[%c0_26, %c0_27, %c0_28] : memref<1x1x24xf32, #tpu.memory_space<vmem>>, vector<1x1x24xf32>
    %36 = vector.shape_cast %35 : vector<1x1x24xf32> to vector<1x24xf32>
    %37 = vector.broadcast %36 : vector<1x24xf32> to vector<80x24xf32>
    %38 = arith.addf %34, %37 : vector<80x24xf32>
    %cst_29 = arith.constant 0.000000e+00 : f32
    %39 = vector.broadcast %cst_29 : f32 to vector<80x24xf32>
    %40 = arith.maximumf %38, %39 : vector<80x24xf32>
    %41 = arith.truncf %40 : vector<80x24xf32> to vector<80x24xbf16>
    %c0_30 = arith.constant 0 : index
    %c0_31 = arith.constant 0 : index
    %c0_32 = arith.constant 0 : index
    %42 = vector.load %arg6[%c0_30, %c0_31, %c0_32] : memref<1x24x128xbf16, #tpu.memory_space<vmem>>, vector<1x24x128xbf16>
    %43 = vector.shape_cast %42 : vector<1x24x128xbf16> to vector<24x128xbf16>
    %cst_33 = arith.constant dense<0.000000e+00> : vector<80x128xf32>
    %44 = tpu.matmul %41, %43, %cst_33 {dimension_numbers = #tpu.dot_dimension_numbers<[1], [0], [0], [1], [0, 0, 1, 1], [], []>} : vector<80x24xbf16>, vector<24x128xbf16>, vector<80x128xf32> -> vector<80x128xf32>
    %c0_34 = arith.constant 0 : index
    %c0_35 = arith.constant 0 : index
    %c0_36 = arith.constant 0 : index
    %45 = vector.load %arg7[%c0_34, %c0_35, %c0_36] : memref<1x40x128xf32, #tpu.memory_space<vmem>>, vector<1x40x128xf32>
    %46 = vector.shape_cast %45 : vector<1x40x128xf32> to vector<40x128xf32>
    %47 = tpu.concatenate %46, %46 in 0 : vector<40x128xf32>, vector<40x128xf32> -> vector<80x128xf32>
    %48 = arith.addf %44, %47 : vector<80x128xf32>
    %49 = arith.truncf %48 : vector<80x128xf32> to vector<80x128xbf16>
    %c0_37 = arith.constant 0 : index
    %c0_38 = arith.constant 0 : index
    %c0_39 = arith.constant 0 : index
    %c0_40 = arith.constant 0 : index
    %50 = vector.load %arg8[%c0_37, %c0_38, %c0_39, %c0_40] : memref<1x2x128x64xbf16, #tpu.memory_space<vmem>>, vector<1x1x128x64xbf16>
    %51 = vector.shape_cast %50 : vector<1x1x128x64xbf16> to vector<128x64xbf16>
    %cst_41 = arith.constant dense<0.000000e+00> : vector<80x64xf32>
    %52 = tpu.matmul %49, %51, %cst_41 {dimension_numbers = #tpu.dot_dimension_numbers<[1], [0], [0], [1], [0, 0, 1, 1], [], []>} : vector<80x128xbf16>, vector<128x64xbf16>, vector<80x64xf32> -> vector<80x64xf32>
    %c0_42 = arith.constant 0 : index
    %c0_43 = arith.constant 0 : index
    %c0_44 = arith.constant 0 : index
    %c0_45 = arith.constant 0 : index
    %53 = vector.load %arg9[%c0_42, %c0_43, %c0_44, %c0_45] : memref<1x2x1x64xf32, #tpu.memory_space<vmem>>, vector<1x1x1x64xf32>
    %54 = vector.shape_cast %53 : vector<1x1x1x64xf32> to vector<1x64xf32>
    %55 = vector.broadcast %54 : vector<1x64xf32> to vector<80x64xf32>
    %56 = arith.addf %52, %55 : vector<80x64xf32>
    %cst_46 = arith.constant 0.000000e+00 : f32
    %57 = vector.broadcast %cst_46 : f32 to vector<80x64xf32>
    %58 = arith.maximumf %56, %57 : vector<80x64xf32>
    %59 = arith.truncf %58 : vector<80x64xf32> to vector<80x64xbf16>
    %c0_47 = arith.constant 0 : index
    %c0_48 = arith.constant 0 : index
    %c0_49 = arith.constant 0 : index
    %c0_50 = arith.constant 0 : index
    %60 = vector.load %arg10[%c0_47, %c0_48, %c0_49, %c0_50] : memref<1x2x64x128xbf16, #tpu.memory_space<vmem>>, vector<1x1x64x128xbf16>
    %61 = vector.shape_cast %60 : vector<1x1x64x128xbf16> to vector<64x128xbf16>
    %cst_51 = arith.constant dense<0.000000e+00> : vector<80x128xf32>
    %62 = tpu.matmul %59, %61, %cst_51 {dimension_numbers = #tpu.dot_dimension_numbers<[1], [0], [0], [1], [0, 0, 1, 1], [], []>} : vector<80x64xbf16>, vector<64x128xbf16>, vector<80x128xf32> -> vector<80x128xf32>
    %c0_52 = arith.constant 0 : index
    %c0_53 = arith.constant 0 : index
    %c0_54 = arith.constant 0 : index
    %c0_55 = arith.constant 0 : index
    %63 = vector.load %arg11[%c0_52, %c0_53, %c0_54, %c0_55] : memref<1x2x1x128xf32, #tpu.memory_space<vmem>>, vector<1x1x1x128xf32>
    %64 = vector.shape_cast %63 : vector<1x1x1x128xf32> to vector<1x128xf32>
    %65 = vector.broadcast %64 : vector<1x128xf32> to vector<80x128xf32>
    %66 = arith.addf %62, %65 : vector<80x128xf32>
    %67 = arith.addf %66, %48 : vector<80x128xf32>
    %68 = arith.truncf %67 : vector<80x128xf32> to vector<80x128xbf16>
    %c0_56 = arith.constant 0 : index
    %c1_57 = arith.constant 1 : index
    %c0_58 = arith.constant 0 : index
    %c0_59 = arith.constant 0 : index
    %69 = vector.load %arg8[%c0_56, %c1_57, %c0_58, %c0_59] : memref<1x2x128x64xbf16, #tpu.memory_space<vmem>>, vector<1x1x128x64xbf16>
    %70 = vector.shape_cast %69 : vector<1x1x128x64xbf16> to vector<128x64xbf16>
    %cst_60 = arith.constant dense<0.000000e+00> : vector<80x64xf32>
    %71 = tpu.matmul %68, %70, %cst_60 {dimension_numbers = #tpu.dot_dimension_numbers<[1], [0], [0], [1], [0, 0, 1, 1], [], []>} : vector<80x128xbf16>, vector<128x64xbf16>, vector<80x64xf32> -> vector<80x64xf32>
    %c0_61 = arith.constant 0 : index
    %c1_62 = arith.constant 1 : index
    %c0_63 = arith.constant 0 : index
    %c0_64 = arith.constant 0 : index
    %72 = vector.load %arg9[%c0_61, %c1_62, %c0_63, %c0_64] : memref<1x2x1x64xf32, #tpu.memory_space<vmem>>, vector<1x1x1x64xf32>
    %73 = vector.shape_cast %72 : vector<1x1x1x64xf32> to vector<1x64xf32>
    %74 = vector.broadcast %73 : vector<1x64xf32> to vector<80x64xf32>
    %75 = arith.addf %71, %74 : vector<80x64xf32>
    %cst_65 = arith.constant 0.000000e+00 : f32
    %76 = vector.broadcast %cst_65 : f32 to vector<80x64xf32>
    %77 = arith.maximumf %75, %76 : vector<80x64xf32>
    %78 = arith.truncf %77 : vector<80x64xf32> to vector<80x64xbf16>
    %c0_66 = arith.constant 0 : index
    %c1_67 = arith.constant 1 : index
    %c0_68 = arith.constant 0 : index
    %c0_69 = arith.constant 0 : index
    %79 = vector.load %arg10[%c0_66, %c1_67, %c0_68, %c0_69] : memref<1x2x64x128xbf16, #tpu.memory_space<vmem>>, vector<1x1x64x128xbf16>
    %80 = vector.shape_cast %79 : vector<1x1x64x128xbf16> to vector<64x128xbf16>
    %cst_70 = arith.constant dense<0.000000e+00> : vector<80x128xf32>
    %81 = tpu.matmul %78, %80, %cst_70 {dimension_numbers = #tpu.dot_dimension_numbers<[1], [0], [0], [1], [0, 0, 1, 1], [], []>} : vector<80x64xbf16>, vector<64x128xbf16>, vector<80x128xf32> -> vector<80x128xf32>
    %c0_71 = arith.constant 0 : index
    %c1_72 = arith.constant 1 : index
    %c0_73 = arith.constant 0 : index
    %c0_74 = arith.constant 0 : index
    %82 = vector.load %arg11[%c0_71, %c1_72, %c0_73, %c0_74] : memref<1x2x1x128xf32, #tpu.memory_space<vmem>>, vector<1x1x1x128xf32>
    %83 = vector.shape_cast %82 : vector<1x1x1x128xf32> to vector<1x128xf32>
    %84 = vector.broadcast %83 : vector<1x128xf32> to vector<80x128xf32>
    %85 = arith.addf %81, %84 : vector<80x128xf32>
    %86 = arith.addf %85, %67 : vector<80x128xf32>
    %87 = vector.extract_strided_slice %86 {offsets = [0, 0], sizes = [40, 128], strides = [1, 1]} : vector<80x128xf32> to vector<40x128xf32>
    %cst_75 = arith.constant dense<0xFF800000> : vector<128xf32>
    %88 = vector.multi_reduction <maximumf>, %87, %cst_75 [0] : vector<40x128xf32> to vector<128xf32>
    %89 = vector.shape_cast %88 : vector<128xf32> to vector<1x128xf32>
    %90 = vector.extract_strided_slice %86 {offsets = [40, 0], sizes = [40, 128], strides = [1, 1]} : vector<80x128xf32> to vector<40x128xf32>
    %cst_76 = arith.constant dense<0xFF800000> : vector<128xf32>
    %91 = vector.multi_reduction <maximumf>, %90, %cst_76 [0] : vector<40x128xf32> to vector<128xf32>
    %92 = vector.shape_cast %91 : vector<128xf32> to vector<1x128xf32>
    %93 = tpu.concatenate %89, %92 in 0 : vector<1x128xf32>, vector<1x128xf32> -> vector<2x128xf32>
    %94 = arith.truncf %93 : vector<2x128xf32> to vector<2x128xbf16>
    %c0_77 = arith.constant 0 : index
    %c0_78 = arith.constant 0 : index
    %c0_79 = arith.constant 0 : index
    %95 = vector.load %arg12[%c0_77, %c0_78, %c0_79] : memref<1x128x1xbf16, #tpu.memory_space<vmem>>, vector<1x128x1xbf16>
    %96 = vector.shape_cast %95 : vector<1x128x1xbf16> to vector<128x1xbf16>
    %cst_80 = arith.constant dense<0.000000e+00> : vector<2x1xf32>
    %97 = tpu.matmul %94, %96, %cst_80 {dimension_numbers = #tpu.dot_dimension_numbers<[1], [0], [0], [1], [0, 0, 1, 1], [], []>} : vector<2x128xbf16>, vector<128x1xbf16>, vector<2x1xf32> -> vector<2x1xf32>
    %c0_81 = arith.constant 0 : index
    %c0_82 = arith.constant 0 : index
    %c0_83 = arith.constant 0 : index
    %98 = vector.load %arg13[%c0_81, %c0_82, %c0_83] : memref<1x1x1xf32, #tpu.memory_space<vmem>>, vector<1x1x1xf32>
    %99 = vector.shape_cast %98 : vector<1x1x1xf32> to vector<1x1xf32>
    %100 = vector.broadcast %99 : vector<1x1xf32> to vector<2x1xf32>
    %101 = arith.addf %97, %100 : vector<2x1xf32>
    %c0_84 = arith.constant 0 : index
    %c0_85 = arith.constant 0 : index
    %c0_86 = arith.constant 0 : index
    %102 = vector.load %arg14[%c0_84, %c0_85, %c0_86] : memref<1x2x1xf32, #tpu.memory_space<vmem>>, vector<1x2x1xf32>
    %103 = vector.shape_cast %102 : vector<1x2x1xf32> to vector<2x1xf32>
    %104 = vector.shape_cast %101 : vector<2x1xf32> to vector<1x2x1xf32>
    tpu.vector_store %arg14[%c0_84, %c0_85, %c0_86], %104 {strides = array<i32>} : memref<1x2x1xf32, #tpu.memory_space<vmem>>, vector<1x2x1xf32>,
    return
  }
  func.func @transform_0(%arg0: i32) -> (i32, i32, i32) {
    %c0_i32 = arith.constant 0 : i32
    %c0_i32_0 = arith.constant 0 : i32
    %c0_i32_1 = arith.constant 0 : i32
    return %arg0, %c0_i32, %c0_i32_0 : i32, i32, i32
  }
  func.func @transform_1(%arg0: i32) -> (i32, i32, i32) {
    %c0_i32 = arith.constant 0 : i32
    %c0_i32_0 = arith.constant 0 : i32
    %c0_i32_1 = arith.constant 0 : i32
    return %arg0, %c0_i32, %c0_i32_0 : i32, i32, i32
  }
  func.func @transform_2(%arg0: i32) -> (i32, i32, i32) {
    %c0_i32 = arith.constant 0 : i32
    %c0_i32_0 = arith.constant 0 : i32
    %c0_i32_1 = arith.constant 0 : i32
    return %arg0, %c0_i32, %c0_i32_0 : i32, i32, i32
  }
  func.func @transform_3(%arg0: i32) -> (i32, i32, i32, i32) {
    %c0_i32 = arith.constant 0 : i32
    %c0_i32_0 = arith.constant 0 : i32
    %c0_i32_1 = arith.constant 0 : i32
    %c0_i32_2 = arith.constant 0 : i32
    return %arg0, %c0_i32, %c0_i32_0, %c0_i32_1 : i32, i32, i32, i32
  }
  func.func @transform_4(%arg0: i32) -> (i32, i32, i32) {
    %c0_i32 = arith.constant 0 : i32
    %c0_i32_0 = arith.constant 0 : i32
    %c0_i32_1 = arith.constant 0 : i32
    return %arg0, %c0_i32, %c0_i32_0 : i32, i32, i32
  }
  func.func @transform_5(%arg0: i32) -> (i32, i32, i32) {
    %c0_i32 = arith.constant 0 : i32
    %c0_i32_0 = arith.constant 0 : i32
    %c0_i32_1 = arith.constant 0 : i32
    return %arg0, %c0_i32, %c0_i32_0 : i32, i32, i32
  }
  func.func @transform_6(%arg0: i32) -> (i32, i32, i32) {
    %c0_i32 = arith.constant 0 : i32
    %c0_i32_0 = arith.constant 0 : i32
    %c0_i32_1 = arith.constant 0 : i32
    return %arg0, %c0_i32, %c0_i32_0 : i32, i32, i32
  }
  func.func @transform_7(%arg0: i32) -> (i32, i32, i32, i32) {
    %c0_i32 = arith.constant 0 : i32
    %c0_i32_0 = arith.constant 0 : i32
    %c0_i32_1 = arith.constant 0 : i32
    %c0_i32_2 = arith.constant 0 : i32
    return %arg0, %c0_i32, %c0_i32_0, %c0_i32_1 : i32, i32, i32, i32
  }
  func.func @transform_8(%arg0: i32) -> (i32, i32, i32, i32) {
    %c0_i32 = arith.constant 0 : i32
    %c0_i32_0 = arith.constant 0 : i32
    %c0_i32_1 = arith.constant 0 : i32
    %c0_i32_2 = arith.constant 0 : i32
    return %arg0, %c0_i32, %c0_i32_0, %c0_i32_1 : i32, i32, i32, i32
  }
  func.func @transform_9(%arg0: i32) -> (i32, i32, i32, i32) {
    %c0_i32 = arith.constant 0 : i32
    %c0_i32_0 = arith.constant 0 : i32
    %c0_i32_1 = arith.constant 0 : i32
    %c0_i32_2 = arith.constant 0 : i32
    return %arg0, %c0_i32, %c0_i32_0, %c0_i32_1 : i32, i32, i32, i32
  }
  func.func @transform_10(%arg0: i32) -> (i32, i32, i32, i32) {
    %c0_i32 = arith.constant 0 : i32
    %c0_i32_0 = arith.constant 0 : i32
    %c0_i32_1 = arith.constant 0 : i32
    %c0_i32_2 = arith.constant 0 : i32
    return %arg0, %c0_i32, %c0_i32_0, %c0_i32_1 : i32, i32, i32, i32
  }
  func.func @transform_11(%arg0: i32) -> (i32, i32, i32) {
    %c0_i32 = arith.constant 0 : i32
    %c0_i32_0 = arith.constant 0 : i32
    %c0_i32_1 = arith.constant 0 : i32
    return %arg0, %c0_i32, %c0_i32_0 : i32, i32, i32
  }
  func.func @transform_12(%arg0: i32) -> (i32, i32, i32) {
    %c0_i32 = arith.constant 0 : i32
    %c0_i32_0 = arith.constant 0 : i32
    %c0_i32_1 = arith.constant 0 : i32
    return %arg0, %c0_i32, %c0_i32_0 : i32, i32, i32
  }
  func.func @transform_13(%arg0: i32) -> (i32, i32, i32) {
    %c0_i32 = arith.constant 0 : i32
    %c0_i32_0 = arith.constant 0 : i32
    %c0_i32_1 = arith.constant 0 : i32
    return %arg0, %c0_i32, %c0_i32_0 : i32, i32, i32
  }
}

</mosaic_0001>

<llo_original>
// kernel: _lambda_.1
$region0: #{_lambda_.1}
  #allocation0 [shape = 'u32[]', space=smem, size = 0x4, offset = 0x4, fixed_abs, tag = 'smem constant byte address 0x4 - core index']
  #allocation1 [shape = 'u32[72,128]{1,0:T(1,128)}', space=vmem, size = 0x9000, scoped, tag = 'internal scratch']
  %s0 = inlined_call_operand.vmem [shape: f32[2,320,12], index: 0, kind: input, shape index: {}]
  %s1 = inlined_call_operand.vmem [shape: bf16[2,12,24], index: 1, kind: input, shape index: {}]
  %s2 = inlined_call_operand.vmem [shape: f32[2,1,24], index: 2, kind: input, shape index: {}]
  %s3 = inlined_call_operand.vmem [shape: bf16[2,4,24,24], index: 3, kind: input, shape index: {}]
  %s4 = inlined_call_operand.vmem [shape: f32[2,1,24], index: 4, kind: input, shape index: {}]
  %s5 = inlined_call_operand.vmem [shape: bf16[2,24,128], index: 5, kind: input, shape index: {}]
  %s6 = inlined_call_operand.vmem [shape: f32[2,40,128], index: 6, kind: input, shape index: {}]
  %s7 = inlined_call_operand.vmem [shape: bf16[2,2,128,64], index: 7, kind: input, shape index: {}]
  %s8 = inlined_call_operand.vmem [shape: f32[2,2,1,64], index: 8, kind: input, shape index: {}]
  %s9 = inlined_call_operand.vmem [shape: bf16[2,2,64,128], index: 9, kind: input, shape index: {}]
  %s10 = inlined_call_operand.vmem [shape: f32[2,2,1,128], index: 10, kind: input, shape index: {}]
  %s11 = inlined_call_operand.vmem [shape: bf16[2,128,1], index: 11, kind: input, shape index: {}]
  %s12 = inlined_call_operand.vmem [shape: f32[2,1,1], index: 12, kind: input, shape index: {}]
  %s13 = inlined_call_operand.vmem [shape: f32[2,2,1], index: 13, kind: output, shape index: {}]
  %s14 = sld [smem:[#allocation0]]
  $region85: #{_lambda_.1} parent=0
    _
  %s16 = ssub.s32 1, %s14
  %s17 = scalar_select 0, %s16, %s14
  loop: start=0, step=1, limit=4
  $region2: #{_lambda_.1} parent=0 // loop_pre_header
    _
  $region3: #{_lambda_.1} parent=0 // loop_header
    %s19 = sphi 0, %s23
    %p20 = scmp.ge.s32.totalorder %s19, 4
    %s29 = sphi 0, %s31
    %s32 = sphi 0, %s29
    %s33 = sphi 0, %s32
    %s49 = sphi 0, %s33
    %s55 = sphi 0, %s57
    %s58 = sphi 0, %s55
    %s59 = sphi 0, %s58
    %s75 = sphi 0, %s59
    %s81 = sphi 0, %s83
    %s84 = sphi 0, %s81
    %s85 = sphi 0, %s84
    %s101 = sphi 0, %s85
    %s107 = sphi 0, %s109
    %s110 = sphi 0, %s107
    %s111 = sphi 0, %s110
    %s127 = sphi 0, %s111
    %s133 = sphi 0, %s135
    %s136 = sphi 0, %s133
    %s137 = sphi 0, %s136
    %s153 = sphi 0, %s137
    %s159 = sphi 0, %s161
    %s162 = sphi 0, %s159
    %s163 = sphi 0, %s162
    %s179 = sphi 0, %s163
    %s185 = sphi 0, %s187
    %s188 = sphi 0, %s185
    %s189 = sphi 0, %s188
    %s205 = sphi 0, %s189
    %s211 = sphi 0, %s213
    %s214 = sphi 0, %s211
    %s215 = sphi 0, %s214
    %s231 = sphi 0, %s215
    %s237 = sphi 0, %s239
    %s240 = sphi 0, %s237
    %s241 = sphi 0, %s240
    %s257 = sphi 0, %s241
    %s263 = sphi 0, %s265
    %s266 = sphi 0, %s263
    %s267 = sphi 0, %s266
    %s283 = sphi 0, %s267
    %s289 = sphi 0, %s291
    %s292 = sphi 0, %s289
    %s293 = sphi 0, %s292
    %s309 = sphi 0, %s293
    %s315 = sphi 0, %s317
    %s318 = sphi 0, %s315
    %s319 = sphi 0, %s318
    %s335 = sphi 0, %s319
    %s341 = sphi 0, %s343
    %s344 = sphi 0, %s341
    %s345 = sphi 0, %s344
    %s361 = sphi 0, %s345
    %s367 = sphi 0, %s369
    %s370 = sphi 0, %s367
    %s371 = sphi 0, %s370
    %s387 = sphi 0, %s371
  $region4: #{_lambda_.1} parent=0 // loop_header_branch
    %22 = sbr.rel (%p20) target = $region8
  $region5: #{_lambda_.1} parent=0 // loop_body
    %s24 = ssub.s32 %s19, 1
    %s25 = ssub.s32 %s19, 2
    %s26 = sadd.s32 %s19, 1
    %s27 = ssub.s32 %s19, %s26
    %p28 = scmp.eq.s32.totalorder %s27, 0
    %s30 = sadd.s32 %s29, 1
    %s31 = scalar_select %p28, %s29, %s30
    %p34 = pneg %p28
    %p35 = scmp.eq.s32.totalorder %s19, 1
    %p36 = por %p34, %p35
    %p37 = scmp.ne.s32.totalorder %s29, %s32
    %p38 = scmp.eq.s32.totalorder %s19, 0
    %p39 = por %p37, %p38
    %p40 = scmp.ne.s32.totalorder %s29, %s32
    %p41 = scmp.eq.s32.totalorder %s24, 1
    %p42 = por %p40, %p41
    %p43 = scmp.ne.s32.totalorder %s32, %s33
    %p44 = scmp.eq.s32.totalorder %s24, 0
    %p45 = por %p43, %p44
    %p46 = scmp.ne.s32.totalorder %s32, %s33
    %p47 = scmp.eq.s32.totalorder %s25, 1
    %p48 = por %p46, %p47
    %p50 = scmp.ne.s32.totalorder %s33, %s49
    %p51 = scmp.eq.s32.totalorder %s25, 0
    %p52 = por %p50, %p51
    %s53 = ssub.s32 %s19, %s26
    %p54 = scmp.eq.s32.totalorder %s53, 0
    %s56 = sadd.s32 %s55, 1
    %s57 = scalar_select %p54, %s55, %s56
    %p60 = pneg %p54
    %p61 = scmp.eq.s32.totalorder %s19, 1
    %p62 = por %p60, %p61
    %p63 = scmp.ne.s32.totalorder %s55, %s58
    %p64 = scmp.eq.s32.totalorder %s19, 0
    %p65 = por %p63, %p64
    %p66 = scmp.ne.s32.totalorder %s55, %s58
    %p67 = scmp.eq.s32.totalorder %s24, 1
    %p68 = por %p66, %p67
    %p69 = scmp.ne.s32.totalorder %s58, %s59
    %p70 = scmp.eq.s32.totalorder %s24, 0
    %p71 = por %p69, %p70
    %p72 = scmp.ne.s32.totalorder %s58, %s59
    %p73 = scmp.eq.s32.totalorder %s25, 1
    %p74 = por %p72, %p73
    %p76 = scmp.ne.s32.totalorder %s59, %s75
    %p77 = scmp.eq.s32.totalorder %s25, 0
    %p78 = por %p76, %p77
    %s79 = ssub.s32 %s19, %s26
    %p80 = scmp.eq.s32.totalorder %s79, 0
    %s82 = sadd.s32 %s81, 1
    %s83 = scalar_select %p80, %s81, %s82
    %p86 = pneg %p80
    %p87 = scmp.eq.s32.totalorder %s19, 1
    %p88 = por %p86, %p87
    %p89 = scmp.ne.s32.totalorder %s81, %s84
    %p90 = scmp.eq.s32.totalorder %s19, 0
    %p91 = por %p89, %p90
    %p92 = scmp.ne.s32.totalorder %s81, %s84
    %p93 = scmp.eq.s32.totalorder %s24, 1
    %p94 = por %p92, %p93
    %p95 = scmp.ne.s32.totalorder %s84, %s85
    %p96 = scmp.eq.s32.totalorder %s24, 0
    %p97 = por %p95, %p96
    %p98 = scmp.ne.s32.totalorder %s84, %s85
    %p99 = scmp.eq.s32.totalorder %s25, 1
    %p100 = por %p98, %p99
    %p102 = scmp.ne.s32.totalorder %s85, %s101
    %p103 = scmp.eq.s32.totalorder %s25, 0
    %p104 = por %p102, %p103
    %s105 = ssub.s32 %s19, %s26
    %p106 = scmp.eq.s32.totalorder %s105, 0
    %s108 = sadd.s32 %s107, 1
    %s109 = scalar_select %p106, %s107, %s108
    %p112 = pneg %p106
    %p113 = scmp.eq.s32.totalorder %s19, 1
    %p114 = por %p112, %p113
    %p115 = scmp.ne.s32.totalorder %s107, %s110
    %p116 = scmp.eq.s32.totalorder %s19, 0
    %p117 = por %p115, %p116
    %p118 = scmp.ne.s32.totalorder %s107, %s110
    %p119 = scmp.eq.s32.totalorder %s24, 1
    %p120 = por %p118, %p119
    %p121 = scmp.ne.s32.totalorder %s110, %s111
    %p122 = scmp.eq.s32.totalorder %s24, 0
    %p123 = por %p121, %p122
    %p124 = scmp.ne.s32.totalorder %s110, %s111
    %p125 = scmp.eq.s32.totalorder %s25, 1
    %p126 = por %p124, %p125
    %p128 = scmp.ne.s32.totalorder %s111, %s127
    %p129 = scmp.eq.s32.totalorder %s25, 0
    %p130 = por %p128, %p129
    %s131 = ssub.s32 %s19, %s26
    %p132 = scmp.eq.s32.totalorder %s131, 0
    %s134 = sadd.s32 %s133, 1
    %s135 = scalar_select %p132, %s133, %s134
    %p138 = pneg %p132
    %p139 = scmp.eq.s32.totalorder %s19, 1
    %p140 = por %p138, %p139
    %p141 = scmp.ne.s32.totalorder %s133, %s136
    %p142 = scmp.eq.s32.totalorder %s19, 0
    %p143 = por %p141, %p142
    %p144 = scmp.ne.s32.totalorder %s133, %s136
    %p145 = scmp.eq.s32.totalorder %s24, 1
    %p146 = por %p144, %p145
    %p147 = scmp.ne.s32.totalorder %s136, %s137
    %p148 = scmp.eq.s32.totalorder %s24, 0
    %p149 = por %p147, %p148
    %p150 = scmp.ne.s32.totalorder %s136, %s137
    %p151 = scmp.eq.s32.totalorder %s25, 1
    %p152 = por %p150, %p151
    %p154 = scmp.ne.s32.totalorder %s137, %s153
    %p155 = scmp.eq.s32.totalorder %s25, 0
    %p156 = por %p154, %p155
    %s157 = ssub.s32 %s19, %s26
    %p158 = scmp.eq.s32.totalorder %s157, 0
    %s160 = sadd.s32 %s159, 1
    %s161 = scalar_select %p158, %s159, %s160
    %p164 = pneg %p158
    %p165 = scmp.eq.s32.totalorder %s19, 1
    %p166 = por %p164, %p165
    %p167 = scmp.ne.s32.totalorder %s159, %s162
    %p168 = scmp.eq.s32.totalorder %s19, 0
    %p169 = por %p167, %p168
    %p170 = scmp.ne.s32.totalorder %s159, %s162
    %p171 = scmp.eq.s32.totalorder %s24, 1
    %p172 = por %p170, %p171
    %p173 = scmp.ne.s32.totalorder %s162, %s163
    %p174 = scmp.eq.s32.totalorder %s24, 0
    %p175 = por %p173, %p174
    %p176 = scmp.ne.s32.totalorder %s162, %s163
    %p177 = scmp.eq.s32.totalorder %s25, 1
    %p178 = por %p176, %p177
    %p180 = scmp.ne.s32.totalorder %s163, %s179
    %p181 = scmp.eq.s32.totalorder %s25, 0
    %p182 = por %p180, %p181
    %s183 = ssub.s32 %s19, %s26
    %p184 = scmp.eq.s32.totalorder %s183, 0
    %s186 = sadd.s32 %s185, 1
    %s187 = scalar_select %p184, %s185, %s186
    %p190 = pneg %p184
    %p191 = scmp.eq.s32.totalorder %s19, 1
    %p192 = por %p190, %p191
    %p193 = scmp.ne.s32.totalorder %s185, %s188
    %p194 = scmp.eq.s32.totalorder %s19, 0
    %p195 = por %p193, %p194
    %p196 = scmp.ne.s32.totalorder %s185, %s188
    %p197 = scmp.eq.s32.totalorder %s24, 1
    %p198 = por %p196, %p197
    %p199 = scmp.ne.s32.totalorder %s188, %s189
    %p200 = scmp.eq.s32.totalorder %s24, 0
    %p201 = por %p199, %p200
    %p202 = scmp.ne.s32.totalorder %s188, %s189
    %p203 = scmp.eq.s32.totalorder %s25, 1
    %p204 = por %p202, %p203
    %p206 = scmp.ne.s32.totalorder %s189, %s205
    %p207 = scmp.eq.s32.totalorder %s25, 0
    %p208 = por %p206, %p207
    %s209 = ssub.s32 %s19, %s26
    %p210 = scmp.eq.s32.totalorder %s209, 0
    %s212 = sadd.s32 %s211, 1
    %s213 = scalar_select %p210, %s211, %s212
    %p216 = pneg %p210
    %p217 = scmp.eq.s32.totalorder %s19, 1
    %p218 = por %p216, %p217
    %p219 = scmp.ne.s32.totalorder %s211, %s214
    %p220 = scmp.eq.s32.totalorder %s19, 0
    %p221 = por %p219, %p220
    %p222 = scmp.ne.s32.totalorder %s211, %s214
    %p223 = scmp.eq.s32.totalorder %s24, 1
    %p224 = por %p222, %p223
    %p225 = scmp.ne.s32.totalorder %s214, %s215
    %p226 = scmp.eq.s32.totalorder %s24, 0
    %p227 = por %p225, %p226
    %p228 = scmp.ne.s32.totalorder %s214, %s215
    %p229 = scmp.eq.s32.totalorder %s25, 1
    %p230 = por %p228, %p229
    %p232 = scmp.ne.s32.totalorder %s215, %s231
    %p233 = scmp.eq.s32.totalorder %s25, 0
    %p234 = por %p232, %p233
    %s235 = ssub.s32 %s19, %s26
    %p236 = scmp.eq.s32.totalorder %s235, 0
    %s238 = sadd.s32 %s237, 1
    %s239 = scalar_select %p236, %s237, %s238
    %p242 = pneg %p236
    %p243 = scmp.eq.s32.totalorder %s19, 1
    %p244 = por %p242, %p243
    %p245 = scmp.ne.s32.totalorder %s237, %s240
    %p246 = scmp.eq.s32.totalorder %s19, 0
    %p247 = por %p245, %p246
    %p248 = scmp.ne.s32.totalorder %s237, %s240
    %p249 = scmp.eq.s32.totalorder %s24, 1
    %p250 = por %p248, %p249
    %p251 = scmp.ne.s32.totalorder %s240, %s241
    %p252 = scmp.eq.s32.totalorder %s24, 0
    %p253 = por %p251, %p252
    %p254 = scmp.ne.s32.totalorder %s240, %s241
    %p255 = scmp.eq.s32.totalorder %s25, 1
    %p256 = por %p254, %p255
    %p258 = scmp.ne.s32.totalorder %s241, %s257
    %p259 = scmp.eq.s32.totalorder %s25, 0
    %p260 = por %p258, %p259
    %s261 = ssub.s32 %s19, %s26
    %p262 = scmp.eq.s32.totalorder %s261, 0
    %s264 = sadd.s32 %s263, 1
    %s265 = scalar_select %p262, %s263, %s264
    %p268 = pneg %p262
    %p269 = scmp.eq.s32.totalorder %s19, 1
    %p270 = por %p268, %p269
    %p271 = scmp.ne.s32.totalorder %s263, %s266
    %p272 = scmp.eq.s32.totalorder %s19, 0
    %p273 = por %p271, %p272
    %p274 = scmp.ne.s32.totalorder %s263, %s266
    %p275 = scmp.eq.s32.totalorder %s24, 1
    %p276 = por %p274, %p275
    %p277 = scmp.ne.s32.totalorder %s266, %s267
    %p278 = scmp.eq.s32.totalorder %s24, 0
    %p279 = por %p277, %p278
    %p280 = scmp.ne.s32.totalorder %s266, %s267
    %p281 = scmp.eq.s32.totalorder %s25, 1
    %p282 = por %p280, %p281
    %p284 = scmp.ne.s32.totalorder %s267, %s283
    %p285 = scmp.eq.s32.totalorder %s25, 0
    %p286 = por %p284, %p285
    %s287 = ssub.s32 %s19, %s26
    %p288 = scmp.eq.s32.totalorder %s287, 0
    %s290 = sadd.s32 %s289, 1
    %s291 = scalar_select %p288, %s289, %s290
    %p294 = pneg %p288
    %p295 = scmp.eq.s32.totalorder %s19, 1
    %p296 = por %p294, %p295
    %p297 = scmp.ne.s32.totalorder %s289, %s292
    %p298 = scmp.eq.s32.totalorder %s19, 0
    %p299 = por %p297, %p298
    %p300 = scmp.ne.s32.totalorder %s289, %s292
    %p301 = scmp.eq.s32.totalorder %s24, 1
    %p302 = por %p300, %p301
    %p303 = scmp.ne.s32.totalorder %s292, %s293
    %p304 = scmp.eq.s32.totalorder %s24, 0
    %p305 = por %p303, %p304
    %p306 = scmp.ne.s32.totalorder %s292, %s293
    %p307 = scmp.eq.s32.totalorder %s25, 1
    %p308 = por %p306, %p307
    %p310 = scmp.ne.s32.totalorder %s293, %s309
    %p311 = scmp.eq.s32.totalorder %s25, 0
    %p312 = por %p310, %p311
    %s313 = ssub.s32 %s19, %s26
    %p314 = scmp.eq.s32.totalorder %s313, 0
    %s316 = sadd.s32 %s315, 1
    %s317 = scalar_select %p314, %s315, %s316
    %p320 = pneg %p314
    %p321 = scmp.eq.s32.totalorder %s19, 1
    %p322 = por %p320, %p321
    %p323 = scmp.ne.s32.totalorder %s315, %s318
    %p324 = scmp.eq.s32.totalorder %s19, 0
    %p325 = por %p323, %p324
    %p326 = scmp.ne.s32.totalorder %s315, %s318
    %p327 = scmp.eq.s32.totalorder %s24, 1
    %p328 = por %p326, %p327
    %p329 = scmp.ne.s32.totalorder %s318, %s319
    %p330 = scmp.eq.s32.totalorder %s24, 0
    %p331 = por %p329, %p330
    %p332 = scmp.ne.s32.totalorder %s318, %s319
    %p333 = scmp.eq.s32.totalorder %s25, 1
    %p334 = por %p332, %p333
    %p336 = scmp.ne.s32.totalorder %s319, %s335
    %p337 = scmp.eq.s32.totalorder %s25, 0
    %p338 = por %p336, %p337
    %s339 = ssub.s32 %s19, %s26
    %p340 = scmp.eq.s32.totalorder %s339, 0
    %s342 = sadd.s32 %s341, 1
    %s343 = scalar_select %p340, %s341, %s342
    %p346 = pneg %p340
    %p347 = scmp.eq.s32.totalorder %s19, 1
    %p348 = por %p346, %p347
    %p349 = scmp.ne.s32.totalorder %s341, %s344
    %p350 = scmp.eq.s32.totalorder %s19, 0
    %p351 = por %p349, %p350
    %p352 = scmp.ne.s32.totalorder %s341, %s344
    %p353 = scmp.eq.s32.totalorder %s24, 1
    %p354 = por %p352, %p353
    %p355 = scmp.ne.s32.totalorder %s344, %s345
    %p356 = scmp.eq.s32.totalorder %s24, 0
    %p357 = por %p355, %p356
    %p358 = scmp.ne.s32.totalorder %s344, %s345
    %p359 = scmp.eq.s32.totalorder %s25, 1
    %p360 = por %p358, %p359
    %p362 = scmp.ne.s32.totalorder %s345, %s361
    %p363 = scmp.eq.s32.totalorder %s25, 0
    %p364 = por %p362, %p363
    %s365 = ssub.s32 %s19, %s26
    %p366 = scmp.eq.s32.totalorder %s365, 0
    %s368 = sadd.s32 %s367, 1
    %s369 = scalar_select %p366, %s367, %s368
    %p372 = pneg %p366
    %p373 = scmp.eq.s32.totalorder %s19, 1
    %p374 = por %p372, %p373
    %p375 = scmp.ne.s32.totalorder %s367, %s370
    %p376 = scmp.eq.s32.totalorder %s19, 0
    %p377 = por %p375, %p376
    %p378 = scmp.ne.s32.totalorder %s367, %s370
    %p379 = scmp.eq.s32.totalorder %s24, 1
    %p380 = por %p378, %p379
    %p381 = scmp.ne.s32.totalorder %s370, %s371
    %p382 = scmp.eq.s32.totalorder %s24, 0
    %p383 = por %p381, %p382
    %p384 = scmp.ne.s32.totalorder %s370, %s371
    %p385 = scmp.eq.s32.totalorder %s25, 1
    %p386 = por %p384, %p385
    %p388 = scmp.ne.s32.totalorder %s371, %s387
    %p389 = scmp.eq.s32.totalorder %s25, 0
    %p390 = por %p388, %p389
    %p391 = scmp.le.s32.totalorder 1, %s19
    %p392 = scmp.lt.s32.totalorder %s19, 3
    %p393 = pnand %p391, %p392
    %p394 = pneg %p393
    // Predicated region
    $region9: #{_lambda_.1} parent=5 // pred_check
      _
    $region10: #{_lambda_.1} parent=5 // pred_check_branch
      %396 = sbr.rel (%p393) target = $region12
    $region11: #{_lambda_.1} parent=5 // pred_region
      %s397 = ssub.s32 %s19, 1
    $region12: #{_lambda_.1} parent=5 // pred_fallthru
      _
    %p398 = scmp.lt.s32.totalorder %s19, 2
    // Predicated region
    $region13: #{_lambda_.1} parent=5 // pred_check
      %p399 = pneg %p398
    $region14: #{_lambda_.1} parent=5 // pred_check_branch
      %401 = sbr.rel (%p399) target = $region16
    $region15: #{_lambda_.1} parent=5 // pred_region
      // Predicated region
      $region17: #{_lambda_.1} parent=15 // pred_check
        %p402 = pneg %p39
      $region18: #{_lambda_.1} parent=15 // pred_check_branch
        %404 = sbr.rel (%p402) target = $region20
      $region19: #{_lambda_.1} parent=15 // pred_region
        %p405 = scmp.lt.s32.totalorder %s19, 1
        %s406 = scalar_select %p405, %s19, 1
        %s407 = smul.addr %s406, 40
        %s408 = smul.addr %s407, 8
        %s409 = scalar_lea.vmem %s0, %s408
      $region20: #{_lambda_.1} parent=15 // pred_fallthru
        _
      // Predicated region
      $region21: #{_lambda_.1} parent=15 // pred_check
        %p410 = pneg %p65
      $region22: #{_lambda_.1} parent=15 // pred_check_branch
        %412 = sbr.rel (%p410) target = $region24
      $region23: #{_lambda_.1} parent=15 // pred_region
        %p413 = scmp.lt.s32.totalorder %s19, 1
        %s414 = scalar_select %p413, %s19, 1
        %s415 = smul.addr %s414, 2
        %s416 = smul.addr %s415, 4
        %s417 = scalar_lea.vmem %s1, %s416
      $region24: #{_lambda_.1} parent=15 // pred_fallthru
        _
      // Predicated region
      $region25: #{_lambda_.1} parent=15 // pred_check
        %p418 = pneg %p91
      $region26: #{_lambda_.1} parent=15 // pred_check_branch
        %420 = sbr.rel (%p418) target = $region28
      $region27: #{_lambda_.1} parent=15 // pred_region
        %p421 = scmp.lt.s32.totalorder %s19, 1
        %s422 = scalar_select %p421, %s19, 1
        %s423 = scalar_lea.vmem %s2, %s422
      $region28: #{_lambda_.1} parent=15 // pred_fallthru
        _
      // Predicated region
      $region29: #{_lambda_.1} parent=15 // pred_check
        %p424 = pneg %p117
      $region30: #{_lambda_.1} parent=15 // pred_check_branch
        %426 = sbr.rel (%p424) target = $region32
      $region31: #{_lambda_.1} parent=15 // pred_region
        %p427 = scmp.lt.s32.totalorder %s19, 1
        %s428 = scalar_select %p427, %s19, 1
        %s429 = smul.addr %s428, 12
        %s430 = smul.addr %s429, 4
        %s431 = scalar_lea.vmem %s3, %s430
      $region32: #{_lambda_.1} parent=15 // pred_fallthru
        _
      // Predicated region
      $region33: #{_lambda_.1} parent=15 // pred_check
        %p432 = pneg %p143
      $region34: #{_lambda_.1} parent=15 // pred_check_branch
        %434 = sbr.rel (%p432) target = $region36
      $region35: #{_lambda_.1} parent=15 // pred_region
        %p435 = scmp.lt.s32.totalorder %s19, 1
        %s436 = scalar_select %p435, %s19, 1
        %s437 = scalar_lea.vmem %s4, %s436
      $region36: #{_lambda_.1} parent=15 // pred_fallthru
        _
      // Predicated region
      $region37: #{_lambda_.1} parent=15 // pred_check
        %p438 = pneg %p169
      $region38: #{_lambda_.1} parent=15 // pred_check_branch
        %440 = sbr.rel (%p438) target = $region40
      $region39: #{_lambda_.1} parent=15 // pred_region
        %p441 = scmp.lt.s32.totalorder %s19, 1
        %s442 = scalar_select %p441, %s19, 1
        %s443 = smul.addr %s442, 3
        %s444 = smul.addr %s443, 4
        %s445 = scalar_lea.vmem %s5, %s444
      $region40: #{_lambda_.1} parent=15 // pred_fallthru
        _
      // Predicated region
      $region41: #{_lambda_.1} parent=15 // pred_check
        %p446 = pneg %p195
      $region42: #{_lambda_.1} parent=15 // pred_check_branch
        %448 = sbr.rel (%p446) target = $region44
      $region43: #{_lambda_.1} parent=15 // pred_region
        %p449 = scmp.lt.s32.totalorder %s19, 1
        %s450 = scalar_select %p449, %s19, 1
        %s451 = smul.addr %s450, 5
        %s452 = smul.addr %s451, 8
        %s453 = scalar_lea.vmem %s6, %s452
      $region44: #{_lambda_.1} parent=15 // pred_fallthru
        _
      // Predicated region
      $region45: #{_lambda_.1} parent=15 // pred_check
        %p454 = pneg %p221
      $region46: #{_lambda_.1} parent=15 // pred_check_branch
        %456 = sbr.rel (%p454) target = $region48
      $region47: #{_lambda_.1} parent=15 // pred_region
        %p457 = scmp.lt.s32.totalorder %s19, 1
        %s458 = scalar_select %p457, %s19, 1
        %s459 = smul.addr %s458, 32
        %s460 = smul.addr %s459, 4
        %s461 = scalar_lea.vmem %s7, %s460
      $region48: #{_lambda_.1} parent=15 // pred_fallthru
        _
      // Predicated region
      $region49: #{_lambda_.1} parent=15 // pred_check
        %p462 = pneg %p247
      $region50: #{_lambda_.1} parent=15 // pred_check_branch
        %464 = sbr.rel (%p462) target = $region52
      $region51: #{_lambda_.1} parent=15 // pred_region
        %p465 = scmp.lt.s32.totalorder %s19, 1
        %s466 = scalar_select %p465, %s19, 1
        %s467 = smul.addr %s466, 2
        %s468 = scalar_lea.vmem %s8, %s467
      $region52: #{_lambda_.1} parent=15 // pred_fallthru
        _
      // Predicated region
      $region53: #{_lambda_.1} parent=15 // pred_check
        %p469 = pneg %p273
      $region54: #{_lambda_.1} parent=15 // pred_check_branch
        %471 = sbr.rel (%p469) target = $region56
      $region55: #{_lambda_.1} parent=15 // pred_region
        %p472 = scmp.lt.s32.totalorder %s19, 1
        %s473 = scalar_select %p472, %s19, 1
        %s474 = smul.addr %s473, 16
        %s475 = smul.addr %s474, 4
        %s476 = scalar_lea.vmem %s9, %s475
      $region56: #{_lambda_.1} parent=15 // pred_fallthru
        _
      // Predicated region
      $region57: #{_lambda_.1} parent=15 // pred_check
        %p477 = pneg %p299
      $region58: #{_lambda_.1} parent=15 // pred_check_branch
        %479 = sbr.rel (%p477) target = $region60
      $region59: #{_lambda_.1} parent=15 // pred_region
        %p480 = scmp.lt.s32.totalorder %s19, 1
        %s481 = scalar_select %p480, %s19, 1
        %s482 = smul.addr %s481, 2
        %s483 = scalar_lea.vmem %s10, %s482
      $region60: #{_lambda_.1} parent=15 // pred_fallthru
        _
      // Predicated region
      $region61: #{_lambda_.1} parent=15 // pred_check
        %p484 = pneg %p325
      $region62: #{_lambda_.1} parent=15 // pred_check_branch
        %486 = sbr.rel (%p484) target = $region64
      $region63: #{_lambda_.1} parent=15 // pred_region
        %p487 = scmp.lt.s32.totalorder %s19, 1
        %s488 = scalar_select %p487, %s19, 1
        %s489 = smul.addr %s488, 16
        %s490 = smul.addr %s489, 4
        %s491 = scalar_lea.vmem %s11, %s490
      $region64: #{_lambda_.1} parent=15 // pred_fallthru
        _
      // Predicated region
      $region65: #{_lambda_.1} parent=15 // pred_check
        %p492 = pneg %p351
      $region66: #{_lambda_.1} parent=15 // pred_check_branch
        %494 = sbr.rel (%p492) target = $region68
      $region67: #{_lambda_.1} parent=15 // pred_region
        %p495 = scmp.lt.s32.totalorder %s19, 1
        %s496 = scalar_select %p495, %s19, 1
        %s497 = scalar_lea.vmem %s12, %s496
      $region68: #{_lambda_.1} parent=15 // pred_fallthru
        _
    $region16: #{_lambda_.1} parent=5 // pred_fallthru
      _
    %p498 = scmp.le.s32.totalorder 1, %s19
    %p499 = scmp.lt.s32.totalorder %s19, 3
    %p500 = pnand %p498, %p499
    %p501 = pneg %p500
    // Predicated region
    $region69: #{_lambda_.1} parent=5 // pred_check
      _
    $region70: #{_lambda_.1} parent=5 // pred_check_branch
      %503 = sbr.rel (%p500) target = $region72
    $region71: #{_lambda_.1} parent=5 // pred_region
      %s504 = ssub.s32 %s19, 1
      %p505 = scmp.lt.s32.totalorder %s24, 1
      %s506 = scalar_select %p505, %s24, 1
      %s507 = smul.addr %s506, 40
      %s508 = smul.addr %s507, 8
      %s509 = scalar_lea.vmem %s0, %s508
      %p510 = pneg %p45
      %p511 = pneg %p42
      %p512 = scmp.lt.s32.totalorder %s24, 1
      %s513 = scalar_select %p512, %s24, 1
      %s514 = smul.addr %s513, 2
      %s515 = smul.addr %s514, 4
      %s516 = scalar_lea.vmem %s1, %s515
      %p517 = pneg %p71
      %p518 = pneg %p68
      %p519 = scmp.lt.s32.totalorder %s24, 1
      %s520 = scalar_select %p519, %s24, 1
      %s521 = scalar_lea.vmem %s2, %s520
      %p522 = pneg %p97
      %p523 = pneg %p94
      %p524 = scmp.lt.s32.totalorder %s24, 1
      %s525 = scalar_select %p524, %s24, 1
      %s526 = smul.addr %s525, 12
      %s527 = smul.addr %s526, 4
      %s528 = scalar_lea.vmem %s3, %s527
      %p529 = pneg %p123
      %p530 = pneg %p120
      %p531 = scmp.lt.s32.totalorder %s24, 1
      %s532 = scalar_select %p531, %s24, 1
      %s533 = scalar_lea.vmem %s4, %s532
      %p534 = pneg %p149
      %p535 = pneg %p146
      %p536 = scmp.lt.s32.totalorder %s24, 1
      %s537 = scalar_select %p536, %s24, 1
      %s538 = smul.addr %s537, 3
      %s539 = smul.addr %s538, 4
      %s540 = scalar_lea.vmem %s5, %s539
      %p541 = pneg %p175
      %p542 = pneg %p172
      %p543 = scmp.lt.s32.totalorder %s24, 1
      %s544 = scalar_select %p543, %s24, 1
      %s545 = smul.addr %s544, 5
      %s546 = smul.addr %s545, 8
      %s547 = scalar_lea.vmem %s6, %s546
      %p548 = pneg %p201
      %p549 = pneg %p198
      %p550 = scmp.lt.s32.totalorder %s24, 1
      %s551 = scalar_select %p550, %s24, 1
      %s552 = smul.addr %s551, 32
      %s553 = smul.addr %s552, 4
      %s554 = scalar_lea.vmem %s7, %s553
      %p555 = pneg %p227
      %p556 = pneg %p224
      %p557 = scmp.lt.s32.totalorder %s24, 1
      %s558 = scalar_select %p557, %s24, 1
      %s559 = smul.addr %s558, 2
      %s560 = scalar_lea.vmem %s8, %s559
      %p561 = pneg %p253
      %p562 = pneg %p250
      %p563 = scmp.lt.s32.totalorder %s24, 1
      %s564 = scalar_select %p563, %s24, 1
      %s565 = smul.addr %s564, 16
      %s566 = smul.addr %s565, 4
      %s567 = scalar_lea.vmem %s9, %s566
      %p568 = pneg %p279
      %p569 = pneg %p276
      %p570 = scmp.lt.s32.totalorder %s24, 1
      %s571 = scalar_select %p570, %s24, 1
      %s572 = smul.addr %s571, 2
      %s573 = scalar_lea.vmem %s10, %s572
      %p574 = pneg %p305
      %p575 = pneg %p302
      %p576 = scmp.lt.s32.totalorder %s24, 1
      %s577 = scalar_select %p576, %s24, 1
      %s578 = smul.addr %s577, 16
      %s579 = smul.addr %s578, 4
      %s580 = scalar_lea.vmem %s11, %s579
      %p581 = pneg %p331
      %p582 = pneg %p328
      %p583 = scmp.lt.s32.totalorder %s24, 1
      %s584 = scalar_select %p583, %s24, 1
      %s585 = scalar_lea.vmem %s12, %s584
      %p586 = pneg %p357
      %p587 = pneg %p354
      %p588 = pneg %p383
      %p589 = pneg %p380
      %p590 = scmp.lt.s32.totalorder %s24, 1
      %s591 = scalar_select %p590, %s24, 1
      %s592 = smul.addr %s591, 2
      %s593 = scalar_lea.vmem %s13, %s592
      %p594 = scmp.lt.s32.totalorder %s24, 1
      %s595 = scalar_select %p594, %s24, 1
      %s596 = smul.addr %s595, 40
      %s597 = smul.addr %s596, 8
      %s598 = scalar_lea.vmem %s0, %s597
      %p599 = scmp.lt.s32.totalorder %s24, 1
      %s600 = scalar_select %p599, %s24, 1
      %s601 = smul.addr %s600, 2
      %s602 = smul.addr %s601, 4
      %s603 = scalar_lea.vmem %s1, %s602
      %p604 = scmp.lt.s32.totalorder %s24, 1
      %s605 = scalar_select %p604, %s24, 1
      %s606 = scalar_lea.vmem %s2, %s605
      %p607 = scmp.lt.s32.totalorder %s24, 1
      %s608 = scalar_select %p607, %s24, 1
      %s609 = smul.addr %s608, 12
      %s610 = smul.addr %s609, 4
      %s611 = scalar_lea.vmem %s3, %s610
      %p612 = scmp.lt.s32.totalorder %s24, 1
      %s613 = scalar_select %p612, %s24, 1
      %s614 = scalar_lea.vmem %s4, %s613
      %p615 = scmp.lt.s32.totalorder %s24, 1
      %s616 = scalar_select %p615, %s24, 1
      %s617 = smul.addr %s616, 3
      %s618 = smul.addr %s617, 4
      %s619 = scalar_lea.vmem %s5, %s618
      %p620 = scmp.lt.s32.totalorder %s24, 1
      %s621 = scalar_select %p620, %s24, 1
      %s622 = smul.addr %s621, 5
      %s623 = smul.addr %s622, 8
      %s624 = scalar_lea.vmem %s6, %s623
      %p625 = scmp.lt.s32.totalorder %s24, 1
      %s626 = scalar_select %p625, %s24, 1
      %s627 = smul.addr %s626, 32
      %s628 = smul.addr %s627, 4
      %s629 = scalar_lea.vmem %s7, %s628
      %p630 = scmp.lt.s32.totalorder %s24, 1
      %s631 = scalar_select %p630, %s24, 1
      %s632 = smul.addr %s631, 2
      %s633 = scalar_lea.vmem %s8, %s632
      %p634 = scmp.lt.s32.totalorder %s24, 1
      %s635 = scalar_select %p634, %s24, 1
      %s636 = smul.addr %s635, 16
      %s637 = smul.addr %s636, 4
      %s638 = scalar_lea.vmem %s9, %s637
      %p639 = scmp.lt.s32.totalorder %s24, 1
      %s640 = scalar_select %p639, %s24, 1
      %s641 = smul.addr %s640, 2
      %s642 = scalar_lea.vmem %s10, %s641
      %p643 = scmp.lt.s32.totalorder %s24, 1
      %s644 = scalar_select %p643, %s24, 1
      %s645 = smul.addr %s644, 16
      %s646 = smul.addr %s645, 4
      %s647 = scalar_lea.vmem %s11, %s646
      %p648 = scmp.lt.s32.totalorder %s24, 1
      %s649 = scalar_select %p648, %s24, 1
      %s650 = scalar_lea.vmem %s12, %s649
      %p651 = scmp.lt.s32.totalorder %s24, 1
      %s652 = scalar_select %p651, %s24, 1
      %s653 = smul.addr %s652, 2
      %s654 = scalar_lea.vmem %s13, %s653
      %v656 = vld [vmem:[%s598] sm:$0xff]
      %v657 = vld [vmem:[%s598 + $0x8] sm:$0xff]
      %v658 = vld [vmem:[%s598 + $0x10] sm:$0xff]
      %v659 = vld [vmem:[%s598 + $0x18] sm:$0xff]
      %v660 = vld [vmem:[%s598 + $0x20] sm:$0xff]
      %v661 = vld [vmem:[%s598 + $0x28] sm:$0xff]
      %v662 = vld [vmem:[%s598 + $0x30] sm:$0xff]
      %v663 = vld [vmem:[%s598 + $0x38] sm:$0xff]
      %v664 = vld [vmem:[%s598 + $0x40] sm:$0xff]
      %v665 = vld [vmem:[%s598 + $0x48] sm:$0xff]
      %v666 = vld [vmem:[%s598 + $0x50] sm:$0xff]
      %v667 = vld [vmem:[%s598 + $0x58] sm:$0xff]
      %v668 = vld [vmem:[%s598 + $0x60] sm:$0xff]
      %v669 = vld [vmem:[%s598 + $0x68] sm:$0xff]
      %v670 = vld [vmem:[%s598 + $0x70] sm:$0xff]
      %v671 = vld [vmem:[%s598 + $0x78] sm:$0xff]
      %v672 = vld [vmem:[%s598 + $0x80] sm:$0xff]
      %v673 = vld [vmem:[%s598 + $0x88] sm:$0xff]
      %v674 = vld [vmem:[%s598 + $0x90] sm:$0xff]
      %v675 = vld [vmem:[%s598 + $0x98] sm:$0xff]
      %v676 = vld [vmem:[%s598 + $0xa0] sm:$0xff]
      %v677 = vld [vmem:[%s598 + $0xa8] sm:$0xff]
      %v678 = vld [vmem:[%s598 + $0xb0] sm:$0xff]
      %v679 = vld [vmem:[%s598 + $0xb8] sm:$0xff]
      %v680 = vld [vmem:[%s598 + $0xc0] sm:$0xff]
      %v681 = vld [vmem:[%s598 + $0xc8] sm:$0xff]
      %v682 = vld [vmem:[%s598 + $0xd0] sm:$0xff]
      %v683 = vld [vmem:[%s598 + $0xd8] sm:$0xff]
      %v684 = vld [vmem:[%s598 + $0xe0] sm:$0xff]
      %v685 = vld [vmem:[%s598 + $0xe8] sm:$0xff]
      %v686 = vld [vmem:[%s598 + $0xf0] sm:$0xff]
      %v687 = vld [vmem:[%s598 + $0xf8] sm:$0xff]
      %v688 = vld [vmem:[%s598 + $0x100] sm:$0xff]
      %v689 = vld [vmem:[%s598 + $0x108] sm:$0xff]
      %v690 = vld [vmem:[%s598 + $0x110] sm:$0xff]
      %v691 = vld [vmem:[%s598 + $0x118] sm:$0xff]
      %v692 = vld [vmem:[%s598 + $0x120] sm:$0xff]
      %v693 = vld [vmem:[%s598 + $0x128] sm:$0xff]
      %v694 = vld [vmem:[%s598 + $0x130] sm:$0xff]
      %v695 = vld [vmem:[%s598 + $0x138] sm:$0xff]
      %v696 = vpack.c.bf16 %v657, %v656
      %v697 = vpack.c.bf16 %v659, %v658
      %v698 = vpack.c.bf16 %v661, %v660
      %v699 = vpack.c.bf16 %v663, %v662
      %v700 = vpack.c.bf16 %v665, %v664
      %v701 = vpack.c.bf16 %v667, %v666
      %v702 = vpack.c.bf16 %v669, %v668
      %v703 = vpack.c.bf16 %v671, %v670
      %v704 = vpack.c.bf16 %v673, %v672
      %v705 = vpack.c.bf16 %v675, %v674
      %v706 = vpack.c.bf16 %v677, %v676
      %v707 = vpack.c.bf16 %v679, %v678
      %v708 = vpack.c.bf16 %v681, %v680
      %v709 = vpack.c.bf16 %v683, %v682
      %v710 = vpack.c.bf16 %v685, %v684
      %v711 = vpack.c.bf16 %v687, %v686
      %v712 = vpack.c.bf16 %v689, %v688
      %v713 = vpack.c.bf16 %v691, %v690
      %v714 = vpack.c.bf16 %v693, %v692
      %v715 = vpack.c.bf16 %v695, %v694
      %v716 = vld [vmem:[%s603] sm:$0xf]
      %v717 = vld [vmem:[%s603 + $0x4] sm:$0x3]
      %v718 = vld [vmem:[%s606] sm:$0x1]
      %v720 = vperm.slane %v718, 0
      %v724 = vunpack.c.l.b16 %v716
      %v725 = vunpack.c.l.b16 %v717
      %v726 = vpack.c.b16 %v725, %v724
      %vm727 = vcmask 97280
      %v729 = vsel %vm727, %v696, 0
      %v732 = vsel %vm727, %v697, 0
      %v735 = vsel %vm727, %v698, 0
      %v738 = vsel %vm727, %v699, 0
      %v741 = vsel %vm727, %v700, 0
      %v744 = vsel %vm727, %v701, 0
      %v747 = vsel %vm727, %v702, 0
      %v750 = vsel %vm727, %v703, 0
      %v753 = vsel %vm727, %v704, 0
      %v756 = vsel %vm727, %v705, 0
      %v759 = vsel %vm727, %v706, 0
      %v762 = vsel %vm727, %v707, 0
      %v765 = vsel %vm727, %v708, 0
      %v768 = vsel %vm727, %v709, 0
      %v771 = vsel %vm727, %v710, 0
      %v774 = vsel %vm727, %v711, 0
      %v777 = vsel %vm727, %v712, 0
      %v780 = vsel %vm727, %v713, 0
      %v783 = vsel %vm727, %v714, 0
      %v786 = vsel %vm727, %v715, 0
      %vm788 = vcmask 1045504
      %v790 = vsel %vm788, %v726, 0
      %792 = vmatpush.bf16.msra.mxu0 0
      %793 = vmatpush.bf16.msra.mxu0 0
      %794 = vmatpush.bf16.msra.mxu0 0
      %795 = vmatpush.bf16.msra.mxu0 0
      %796 = vmatpush.bf16.msra.mxu0 0
      %797 = vmatpush.bf16.msra.mxu0 0
      %798 = vmatpush.bf16.msra.mxu0 0
      %799 = vmatpush.bf16.msra.mxu0 %v790
      %800 = vmatmul.bf16.gmra.mxu0 %v729
      %v801 = vpop.f32.mrf.mxu0
      %v802 = vadd.f32 %v720, %v801
      %v803 = vpop.f32.mrf.mxu0
      %v804 = vadd.f32 %v720, %v803
      %805 = vmatmul.bf16.gmra.mxu0 %v732
      %v806 = vpop.f32.mrf.mxu0
      %v807 = vadd.f32 %v720, %v806
      %v808 = vpop.f32.mrf.mxu0
      %v809 = vadd.f32 %v720, %v808
      %810 = vmatmul.bf16.gmra.mxu0 %v735
      %v811 = vpop.f32.mrf.mxu0
      %v812 = vadd.f32 %v720, %v811
      %v813 = vpop.f32.mrf.mxu0
      %v814 = vadd.f32 %v720, %v813
      %815 = vmatmul.bf16.gmra.mxu0 %v738
      %v816 = vpop.f32.mrf.mxu0
      %v817 = vadd.f32 %v720, %v816
      %v818 = vpop.f32.mrf.mxu0
      %v819 = vadd.f32 %v720, %v818
      %820 = vmatmul.bf16.gmra.mxu0 %v741
      %v821 = vpop.f32.mrf.mxu0
      %v822 = vadd.f32 %v720, %v821
      %v823 = vpop.f32.mrf.mxu0
      %v824 = vadd.f32 %v720, %v823
      %825 = vmatmul.bf16.gmra.mxu0 %v744
      %v826 = vpop.f32.mrf.mxu0
      %v827 = vadd.f32 %v720, %v826
      %v828 = vpop.f32.mrf.mxu0
      %v829 = vadd.f32 %v720, %v828
      %830 = vmatmul.bf16.gmra.mxu0 %v747
      %v831 = vpop.f32.mrf.mxu0
      %v832 = vadd.f32 %v720, %v831
      %v833 = vpop.f32.mrf.mxu0
      %v834 = vadd.f32 %v720, %v833
      %835 = vmatmul.bf16.gmra.mxu0 %v750
      %v836 = vpop.f32.mrf.mxu0
      %v837 = vadd.f32 %v720, %v836
      %v838 = vpop.f32.mrf.mxu0
      %v839 = vadd.f32 %v720, %v838
      %840 = vmatmul.bf16.gmra.mxu0 %v753
      %v841 = vpop.f32.mrf.mxu0
      %v842 = vadd.f32 %v720, %v841
      %v843 = vpop.f32.mrf.mxu0
      %v844 = vadd.f32 %v720, %v843
      %845 = vmatmul.bf16.gmra.mxu0 %v756
      %v846 = vpop.f32.mrf.mxu0
      %v847 = vadd.f32 %v720, %v846
      %v848 = vpop.f32.mrf.mxu0
      %v849 = vadd.f32 %v720, %v848
      %850 = vmatmul.bf16.gmra.mxu0 %v759
      %v851 = vpop.f32.mrf.mxu0
      %v852 = vadd.f32 %v720, %v851
      %v853 = vpop.f32.mrf.mxu0
      %v854 = vadd.f32 %v720, %v853
      %855 = vmatmul.bf16.gmra.mxu0 %v762
      %v856 = vpop.f32.mrf.mxu0
      %v857 = vadd.f32 %v720, %v856
      %v858 = vpop.f32.mrf.mxu0
      %v859 = vadd.f32 %v720, %v858
      %860 = vmatmul.bf16.gmra.mxu0 %v765
      %v861 = vpop.f32.mrf.mxu0
      %v862 = vadd.f32 %v720, %v861
      %v863 = vpop.f32.mrf.mxu0
      %v864 = vadd.f32 %v720, %v863
      %865 = vmatmul.bf16.gmra.mxu0 %v768
      %v866 = vpop.f32.mrf.mxu0
      %v867 = vadd.f32 %v720, %v866
      %v868 = vpop.f32.mrf.mxu0
      %v869 = vadd.f32 %v720, %v868
      %870 = vmatmul.bf16.gmra.mxu0 %v771
      %v871 = vpop.f32.mrf.mxu0
      %v872 = vadd.f32 %v720, %v871
      %v873 = vpop.f32.mrf.mxu0
      %v874 = vadd.f32 %v720, %v873
      %875 = vmatmul.bf16.gmra.mxu0 %v774
      %v876 = vpop.f32.mrf.mxu0
      %v877 = vadd.f32 %v720, %v876
      %v878 = vpop.f32.mrf.mxu0
      %v879 = vadd.f32 %v720, %v878
      %880 = vmatmul.bf16.gmra.mxu0 %v777
      %v881 = vpop.f32.mrf.mxu0
      %v882 = vadd.f32 %v720, %v881
      %v883 = vpop.f32.mrf.mxu0
      %v884 = vadd.f32 %v720, %v883
      %885 = vmatmul.bf16.gmra.mxu0 %v780
      %v886 = vpop.f32.mrf.mxu0
      %v887 = vadd.f32 %v720, %v886
      %v888 = vpop.f32.mrf.mxu0
      %v889 = vadd.f32 %v720, %v888
      %890 = vmatmul.bf16.gmra.mxu0 %v783
      %v891 = vpop.f32.mrf.mxu0
      %v892 = vadd.f32 %v720, %v891
      %v893 = vpop.f32.mrf.mxu0
      %v894 = vadd.f32 %v720, %v893
      %895 = vmatmul.bf16.gmra.mxu0 %v786
      %v896 = vpop.f32.mrf.mxu0
      %v897 = vadd.f32 %v720, %v896
      %v898 = vpop.f32.mrf.mxu0
      %v899 = vadd.f32 %v720, %v898
      %900 = vdwg.mxu0
      %v901 = vmax.f32 %v802, 0.0
      %v902 = vmax.f32 %v804, 0.0
      %v903 = vmax.f32 %v807, 0.0
      %v904 = vmax.f32 %v809, 0.0
      %v905 = vmax.f32 %v812, 0.0
      %v906 = vmax.f32 %v814, 0.0
      %v907 = vmax.f32 %v817, 0.0
      %v908 = vmax.f32 %v819, 0.0
      %v909 = vmax.f32 %v822, 0.0
      %v910 = vmax.f32 %v824, 0.0
      %v911 = vmax.f32 %v827, 0.0
      %v912 = vmax.f32 %v829, 0.0
      %v913 = vmax.f32 %v832, 0.0
      %v914 = vmax.f32 %v834, 0.0
      %v915 = vmax.f32 %v837, 0.0
      %v916 = vmax.f32 %v839, 0.0
      %v917 = vmax.f32 %v842, 0.0
      %v918 = vmax.f32 %v844, 0.0
      %v919 = vmax.f32 %v847, 0.0
      %v920 = vmax.f32 %v849, 0.0
      %v921 = vmax.f32 %v852, 0.0
      %v922 = vmax.f32 %v854, 0.0
      %v923 = vmax.f32 %v857, 0.0
      %v924 = vmax.f32 %v859, 0.0
      %v925 = vmax.f32 %v862, 0.0
      %v926 = vmax.f32 %v864, 0.0
      %v927 = vmax.f32 %v867, 0.0
      %v928 = vmax.f32 %v869, 0.0
      %v929 = vmax.f32 %v872, 0.0
      %v930 = vmax.f32 %v874, 0.0
      %v931 = vmax.f32 %v877, 0.0
      %v932 = vmax.f32 %v879, 0.0
      %v933 = vmax.f32 %v882, 0.0
      %v934 = vmax.f32 %v884, 0.0
      %v935 = vmax.f32 %v887, 0.0
      %v936 = vmax.f32 %v889, 0.0
      %v937 = vmax.f32 %v892, 0.0
      %v938 = vmax.f32 %v894, 0.0
      %v939 = vmax.f32 %v897, 0.0
      %v940 = vmax.f32 %v899, 0.0
      %v941 = vpack.c.bf16 %v902, %v901
      %v942 = vpack.c.bf16 %v904, %v903
      %v943 = vpack.c.bf16 %v906, %v905
      %v944 = vpack.c.bf16 %v908, %v907
      %v945 = vpack.c.bf16 %v910, %v909
      %v946 = vld [vmem:[%s611] sm:$0xf]
      %v947 = vld [vmem:[%s611 + $0x4] sm:$0xf]
      %v948 = vld [vmem:[%s611 + $0x8] sm:$0xf]
      %v949 = vpack.c.bf16 %v912, %v911
      %v950 = vpack.c.bf16 %v914, %v913
      %v951 = vpack.c.bf16 %v916, %v915
      %v952 = vpack.c.bf16 %v918, %v917
      %v953 = vpack.c.bf16 %v920, %v919
      %s954 = scalar_lea.vmem %s611, 12
      %v955 = vld [vmem:[%s954] sm:$0xf]
      %v956 = vld [vmem:[%s954 + $0x4] sm:$0xf]
      %v957 = vld [vmem:[%s954 + $0x8] sm:$0xf]
      %v961 = vunpack.c.l.b16 %v955
      %v962 = vunpack.c.l.b16 %v956
      %v963 = vunpack.c.l.b16 %v957
      %v964 = vpack.c.b16 %v962, %v961
      %v965 = vpack.c.b16 %v963, %v963
      %vm967 = vcmask 195584
      %v969 = vsel %vm967, %v949, 0
      %v972 = vsel %vm967, %v950, 0
      %v975 = vsel %vm967, %v951, 0
      %v978 = vsel %vm967, %v952, 0
      %v981 = vsel %vm967, %v953, 0
      %vm983 = vcmask 1043456
      %v985 = vsel %vm983, %v965, 0
      %987 = vmatpush.bf16.msra.mxu0 0
      %988 = vmatpush.bf16.msra.mxu0 0
      %989 = vmatpush.bf16.msra.mxu0 0
      %990 = vmatpush.bf16.msra.mxu0 0
      %991 = vmatpush.bf16.msra.mxu0 0
      %992 = vmatpush.bf16.msra.mxu0 0
      %993 = vmatpush.bf16.msra.mxu0 %v985
      %994 = vmatpush.bf16.msra.mxu0 %v964
      %995 = vmatmul.bf16.gmra.mxu0 %v969
      %v996 = vpop.f32.mrf.mxu0
      %v997 = vadd.f32 0.0, %v996
      %v998 = vpop.f32.mrf.mxu0
      %v999 = vadd.f32 0.0, %v998
      %1000 = vmatmul.bf16.gmra.mxu0 %v972
      %v1001 = vpop.f32.mrf.mxu0
      %v1002 = vadd.f32 0.0, %v1001
      %v1003 = vpop.f32.mrf.mxu0
      %v1004 = vadd.f32 0.0, %v1003
      %1005 = vmatmul.bf16.gmra.mxu0 %v975
      %v1006 = vpop.f32.mrf.mxu0
      %v1007 = vadd.f32 0.0, %v1006
      %v1008 = vpop.f32.mrf.mxu0
      %v1009 = vadd.f32 0.0, %v1008
      %1010 = vmatmul.bf16.gmra.mxu0 %v978
      %v1011 = vpop.f32.mrf.mxu0
      %v1012 = vadd.f32 0.0, %v1011
      %v1013 = vpop.f32.mrf.mxu0
      %v1014 = vadd.f32 0.0, %v1013
      %1015 = vmatmul.bf16.gmra.mxu0 %v981
      %v1016 = vpop.f32.mrf.mxu0
      %v1017 = vadd.f32 0.0, %v1016
      %v1018 = vpop.f32.mrf.mxu0
      %v1019 = vadd.f32 0.0, %v1018
      %1020 = vdwg.mxu0
      %v1024 = vunpack.c.l.b16 %v946
      %v1025 = vunpack.c.l.b16 %v947
      %v1026 = vunpack.c.l.b16 %v948
      %v1027 = vpack.c.b16 %v1025, %v1024
      %v1028 = vpack.c.b16 %v1026, %v1026
      %v1031 = vsel %vm967, %v941, 0
      %v1034 = vsel %vm967, %v942, 0
      %v1037 = vsel %vm967, %v943, 0
      %v1040 = vsel %vm967, %v944, 0
      %v1043 = vsel %vm967, %v945, 0
      %v1046 = vsel %vm983, %v1028, 0
      %1048 = vmatpush.bf16.msra.mxu0 0
      %1049 = vmatpush.bf16.msra.mxu0 0
      %1050 = vmatpush.bf16.msra.mxu0 0
      %1051 = vmatpush.bf16.msra.mxu0 0
      %1052 = vmatpush.bf16.msra.mxu0 0
      %1053 = vmatpush.bf16.msra.mxu0 0
      %1054 = vmatpush.bf16.msra.mxu0 %v1046
      %1055 = vmatpush.bf16.msra.mxu0 %v1027
      %1056 = vmatmul.bf16.gmra.mxu0 %v1031
      %v1057 = vpop.f32.mrf.mxu0
      %v1058 = vadd.f32 %v997, %v1057
      %v1059 = vpop.f32.mrf.mxu0
      %v1060 = vadd.f32 %v999, %v1059
      %1061 = vmatmul.bf16.gmra.mxu0 %v1034
      %v1062 = vpop.f32.mrf.mxu0
      %v1063 = vadd.f32 %v1002, %v1062
      %v1064 = vpop.f32.mrf.mxu0
      %v1065 = vadd.f32 %v1004, %v1064
      %1066 = vmatmul.bf16.gmra.mxu0 %v1037
      %v1067 = vpop.f32.mrf.mxu0
      %v1068 = vadd.f32 %v1007, %v1067
      %v1069 = vpop.f32.mrf.mxu0
      %v1070 = vadd.f32 %v1009, %v1069
      %1071 = vmatmul.bf16.gmra.mxu0 %v1040
      %v1072 = vpop.f32.mrf.mxu0
      %v1073 = vadd.f32 %v1012, %v1072
      %v1074 = vpop.f32.mrf.mxu0
      %v1075 = vadd.f32 %v1014, %v1074
      %1076 = vmatmul.bf16.gmra.mxu0 %v1043
      %v1077 = vpop.f32.mrf.mxu0
      %v1078 = vadd.f32 %v1017, %v1077
      %v1079 = vpop.f32.mrf.mxu0
      %v1080 = vadd.f32 %v1019, %v1079
      %1081 = vdwg.mxu0
      %v1082 = vpack.c.bf16 %v922, %v921
      %v1083 = vpack.c.bf16 %v924, %v923
      %v1084 = vpack.c.bf16 %v926, %v925
      %v1085 = vpack.c.bf16 %v928, %v927
      %v1086 = vpack.c.bf16 %v930, %v929
      %s1087 = scalar_lea.vmem %s611, 24
      %v1088 = vld [vmem:[%s1087] sm:$0xf]
      %v1089 = vld [vmem:[%s1087 + $0x4] sm:$0xf]
      %v1090 = vld [vmem:[%s1087 + $0x8] sm:$0xf]
      %v1094 = vunpack.c.l.b16 %v1088
      %v1095 = vunpack.c.l.b16 %v1089
      %v1096 = vunpack.c.l.b16 %v1090
      %v1097 = vpack.c.b16 %v1095, %v1094
      %v1098 = vpack.c.b16 %v1096, %v1096
      %v1101 = vsel %vm967, %v1082, 0
      %v1104 = vsel %vm967, %v1083, 0
      %v1107 = vsel %vm967, %v1084, 0
      %v1110 = vsel %vm967, %v1085, 0
      %v1113 = vsel %vm967, %v1086, 0
      %v1116 = vsel %vm983, %v1098, 0
      %1118 = vmatpush.bf16.msra.mxu0 0
      %1119 = vmatpush.bf16.msra.mxu0 0
      %1120 = vmatpush.bf16.msra.mxu0 0
      %1121 = vmatpush.bf16.msra.mxu0 0
      %1122 = vmatpush.bf16.msra.mxu0 0
      %1123 = vmatpush.bf16.msra.mxu0 0
      %1124 = vmatpush.bf16.msra.mxu0 %v1116
      %1125 = vmatpush.bf16.msra.mxu0 %v1097
      %1126 = vmatmul.bf16.gmra.mxu0 %v1101
      %v1127 = vpop.f32.mrf.mxu0
      %v1128 = vadd.f32 0.0, %v1127
      %v1129 = vpop.f32.mrf.mxu0
      %v1130 = vadd.f32 0.0, %v1129
      %1131 = vmatmul.bf16.gmra.mxu0 %v1104
      %v1132 = vpop.f32.mrf.mxu0
      %v1133 = vadd.f32 0.0, %v1132
      %v1134 = vpop.f32.mrf.mxu0
      %v1135 = vadd.f32 0.0, %v1134
      %1136 = vmatmul.bf16.gmra.mxu0 %v1107
      %v1137 = vpop.f32.mrf.mxu0
      %v1138 = vadd.f32 0.0, %v1137
      %v1139 = vpop.f32.mrf.mxu0
      %v1140 = vadd.f32 0.0, %v1139
      %1141 = vmatmul.bf16.gmra.mxu0 %v1110
      %v1142 = vpop.f32.mrf.mxu0
      %v1143 = vadd.f32 0.0, %v1142
      %v1144 = vpop.f32.mrf.mxu0
      %v1145 = vadd.f32 0.0, %v1144
      %1146 = vmatmul.bf16.gmra.mxu0 %v1113
      %v1147 = vpop.f32.mrf.mxu0
      %v1148 = vadd.f32 0.0, %v1147
      %v1149 = vpop.f32.mrf.mxu0
      %v1150 = vadd.f32 0.0, %v1149
      %1151 = vdwg.mxu0
      %v1152 = vadd.f32 %v1058, %v1128
      %v1153 = vadd.f32 %v1060, %v1130
      %v1154 = vadd.f32 %v1063, %v1133
      %v1155 = vadd.f32 %v1065, %v1135
      %v1156 = vadd.f32 %v1068, %v1138
      %v1157 = vadd.f32 %v1070, %v1140
      %v1158 = vadd.f32 %v1073, %v1143
      %v1159 = vadd.f32 %v1075, %v1145
      %v1160 = vadd.f32 %v1078, %v1148
      %v1161 = vadd.f32 %v1080, %v1150
      %v1162 = vpack.c.bf16 %v932, %v931
      %v1163 = vpack.c.bf16 %v934, %v933
      %v1164 = vpack.c.bf16 %v936, %v935
      %v1165 = vpack.c.bf16 %v938, %v937
      %v1166 = vpack.c.bf16 %v940, %v939
      %s1167 = scalar_lea.vmem %s611, 36
      %v1168 = vld [vmem:[%s1167] sm:$0xf]
      %v1169 = vld [vmem:[%s1167 + $0x4] sm:$0xf]
      %v1170 = vld [vmem:[%s1167 + $0x8] sm:$0xf]
      %v1174 = vunpack.c.l.b16 %v1168
      %v1175 = vunpack.c.l.b16 %v1169
      %v1176 = vunpack.c.l.b16 %v1170
      %v1177 = vpack.c.b16 %v1175, %v1174
      %v1178 = vpack.c.b16 %v1176, %v1176
      %v1181 = vsel %vm967, %v1162, 0
      %v1184 = vsel %vm967, %v1163, 0
      %v1187 = vsel %vm967, %v1164, 0
      %v1190 = vsel %vm967, %v1165, 0
      %v1193 = vsel %vm967, %v1166, 0
      %v1196 = vsel %vm983, %v1178, 0
      %1198 = vmatpush.bf16.msra.mxu0 0
      %1199 = vmatpush.bf16.msra.mxu0 0
      %1200 = vmatpush.bf16.msra.mxu0 0
      %1201 = vmatpush.bf16.msra.mxu0 0
      %1202 = vmatpush.bf16.msra.mxu0 0
      %1203 = vmatpush.bf16.msra.mxu0 0
      %1204 = vmatpush.bf16.msra.mxu0 %v1196
      %1205 = vmatpush.bf16.msra.mxu0 %v1177
      %1206 = vmatmul.bf16.gmra.mxu0 %v1181
      %v1207 = vpop.f32.mrf.mxu0
      %v1208 = vadd.f32 0.0, %v1207
      %v1209 = vpop.f32.mrf.mxu0
      %v1210 = vadd.f32 0.0, %v1209
      %1211 = vmatmul.bf16.gmra.mxu0 %v1184
      %v1212 = vpop.f32.mrf.mxu0
      %v1213 = vadd.f32 0.0, %v1212
      %v1214 = vpop.f32.mrf.mxu0
      %v1215 = vadd.f32 0.0, %v1214
      %1216 = vmatmul.bf16.gmra.mxu0 %v1187
      %v1217 = vpop.f32.mrf.mxu0
      %v1218 = vadd.f32 0.0, %v1217
      %v1219 = vpop.f32.mrf.mxu0
      %v1220 = vadd.f32 0.0, %v1219
      %1221 = vmatmul.bf16.gmra.mxu0 %v1190
      %v1222 = vpop.f32.mrf.mxu0
      %v1223 = vadd.f32 0.0, %v1222
      %v1224 = vpop.f32.mrf.mxu0
      %v1225 = vadd.f32 0.0, %v1224
      %1226 = vmatmul.bf16.gmra.mxu0 %v1193
      %v1227 = vpop.f32.mrf.mxu0
      %v1228 = vadd.f32 0.0, %v1227
      %v1229 = vpop.f32.mrf.mxu0
      %v1230 = vadd.f32 0.0, %v1229
      %1231 = vdwg.mxu0
      %v1232 = vadd.f32 %v1152, %v1208
      %v1233 = vadd.f32 %v1153, %v1210
      %v1234 = vadd.f32 %v1154, %v1213
      %v1235 = vadd.f32 %v1155, %v1215
      %v1236 = vadd.f32 %v1156, %v1218
      %v1237 = vadd.f32 %v1157, %v1220
      %v1238 = vadd.f32 %v1158, %v1223
      %v1239 = vadd.f32 %v1159, %v1225
      %v1240 = vadd.f32 %v1160, %v1228
      %v1241 = vadd.f32 %v1161, %v1230
      %v1242 = vld [vmem:[%s614] sm:$0x1]
      %v1244 = vperm.slane %v1242, 0
      %v1246 = vadd.f32 %v1232, %v1244
      %v1247 = vadd.f32 %v1233, %v1244
      %v1248 = vadd.f32 %v1234, %v1244
      %v1249 = vadd.f32 %v1235, %v1244
      %v1250 = vadd.f32 %v1236, %v1244
      %v1251 = vadd.f32 %v1237, %v1244
      %v1252 = vadd.f32 %v1238, %v1244
      %v1253 = vadd.f32 %v1239, %v1244
      %v1254 = vadd.f32 %v1240, %v1244
      %v1255 = vadd.f32 %v1241, %v1244
      %v1256 = vmax.f32 %v1246, 0.0
      %v1257 = vmax.f32 %v1247, 0.0
      %v1258 = vmax.f32 %v1248, 0.0
      %v1259 = vmax.f32 %v1249, 0.0
      %v1260 = vmax.f32 %v1250, 0.0
      %v1261 = vmax.f32 %v1251, 0.0
      %v1262 = vmax.f32 %v1252, 0.0
      %v1263 = vmax.f32 %v1253, 0.0
      %v1264 = vmax.f32 %v1254, 0.0
      %v1265 = vmax.f32 %v1255, 0.0
      %v1266 = vpack.c.bf16 %v1257, %v1256
      %v1267 = vpack.c.bf16 %v1259, %v1258
      %v1268 = vpack.c.bf16 %v1261, %v1260
      %v1269 = vpack.c.bf16 %v1263, %v1262
      %v1270 = vpack.c.bf16 %v1265, %v1264
      %v1271 = vld [vmem:[%s619] sm:$0xf]
      %v1272 = vld [vmem:[%s619 + $0x4] sm:$0xf]
      %v1273 = vld [vmem:[%s619 + $0x8] sm:$0xf]
      %v1274 = vld [vmem:[%s624] sm:$0xff]
      %v1275 = vld [vmem:[%s624 + $0x8] sm:$0xff]
      %v1276 = vld [vmem:[%s624 + $0x10] sm:$0xff]
      %v1277 = vld [vmem:[%s624 + $0x18] sm:$0xff]
      %v1278 = vld [vmem:[%s624 + $0x20] sm:$0xff]
      %v1282 = vunpack.c.l.b16 %v1271
      %v1283 = vunpack.c.l.b16 %v1272
      %v1284 = vunpack.c.l.b16 %v1273
      %v1285 = vpack.c.b16 %v1283, %v1282
      %v1286 = vpack.c.b16 %v1284, %v1284
      %v1289 = vsel %vm967, %v1266, 0
      %v1292 = vsel %vm967, %v1267, 0
      %v1295 = vsel %vm967, %v1268, 0
      %v1298 = vsel %vm967, %v1269, 0
      %v1301 = vsel %vm967, %v1270, 0
      %v1304 = vsel %vm983, %v1286, 0
      %1306 = vmatpush.bf16.msra.mxu0 0
      %1307 = vmatpush.bf16.msra.mxu0 0
      %1308 = vmatpush.bf16.msra.mxu0 0
      %1309 = vmatpush.bf16.msra.mxu0 0
      %1310 = vmatpush.bf16.msra.mxu0 0
      %1311 = vmatpush.bf16.msra.mxu0 0
      %1312 = vmatpush.bf16.msra.mxu0 %v1304
      %1313 = vmatpush.bf16.msra.mxu0 %v1285
      %1314 = vmatmul.bf16.gmra.mxu0 %v1289
      %v1315 = vpop.f32.mrf.mxu0
      %v1316 = vadd.f32 %v1274, %v1315
      %v1317 = vpop.f32.mrf.mxu0
      %v1318 = vadd.f32 %v1275, %v1317
      %1319 = vmatmul.bf16.gmra.mxu0 %v1292
      %v1320 = vpop.f32.mrf.mxu0
      %v1321 = vadd.f32 %v1276, %v1320
      %v1322 = vpop.f32.mrf.mxu0
      %v1323 = vadd.f32 %v1277, %v1322
      %1324 = vmatmul.bf16.gmra.mxu0 %v1295
      %v1325 = vpop.f32.mrf.mxu0
      %v1326 = vadd.f32 %v1278, %v1325
      %v1327 = vpop.f32.mrf.mxu0
      %v1328 = vadd.f32 %v1274, %v1327
      %1329 = vmatmul.bf16.gmra.mxu0 %v1298
      %v1330 = vpop.f32.mrf.mxu0
      %v1331 = vadd.f32 %v1275, %v1330
      %v1332 = vpop.f32.mrf.mxu0
      %v1333 = vadd.f32 %v1276, %v1332
      %1334 = vmatmul.bf16.gmra.mxu0 %v1301
      %v1335 = vpop.f32.mrf.mxu0
      %v1336 = vadd.f32 %v1277, %v1335
      %v1337 = vpop.f32.mrf.mxu0
      %v1338 = vadd.f32 %v1278, %v1337
      %1339 = vdwg.mxu0
      %v1340 = vpack.c.bf16 %v1318, %v1316
      %v1341 = vpack.c.bf16 %v1323, %v1321
      %v1342 = vpack.c.bf16 %v1328, %v1326
      %v1343 = vpack.c.bf16 %v1333, %v1331
      %v1344 = vpack.c.bf16 %v1338, %v1336
      %v1345 = vld [vmem:[%s629] sm:$0xf]
      %v1346 = vld [vmem:[%s629 + $0x4] sm:$0xf]
      %v1347 = vld [vmem:[%s629 + $0x8] sm:$0xf]
      %v1348 = vld [vmem:[%s629 + $0xc] sm:$0xf]
      %v1349 = vld [vmem:[%s629 + $0x10] sm:$0xf]
      %v1350 = vld [vmem:[%s629 + $0x14] sm:$0xf]
      %v1351 = vld [vmem:[%s629 + $0x18] sm:$0xf]
      %v1352 = vld [vmem:[%s629 + $0x1c] sm:$0xf]
      %v1353 = vld [vmem:[%s629 + $0x20] sm:$0xf]
      %v1354 = vld [vmem:[%s629 + $0x24] sm:$0xf]
      %v1355 = vld [vmem:[%s629 + $0x28] sm:$0xf]
      %v1356 = vld [vmem:[%s629 + $0x2c] sm:$0xf]
      %v1357 = vld [vmem:[%s629 + $0x30] sm:$0xf]
      %v1358 = vld [vmem:[%s629 + $0x34] sm:$0xf]
      %v1359 = vld [vmem:[%s629 + $0x38] sm:$0xf]
      %v1360 = vld [vmem:[%s629 + $0x3c] sm:$0xf]
      %v1361 = vld [vmem:[%s633] sm:$0x1]
      %v1363 = vperm.slane %v1361, 0
      %v1381 = vunpack.c.l.b16 %v1345
      %v1382 = vunpack.c.l.b16 %v1346
      %v1383 = vunpack.c.l.b16 %v1347
      %v1384 = vunpack.c.l.b16 %v1348
      %v1385 = vunpack.c.l.b16 %v1349
      %v1386 = vunpack.c.l.b16 %v1350
      %v1387 = vunpack.c.l.b16 %v1351
      %v1388 = vunpack.c.l.b16 %v1352
      %v1389 = vunpack.c.l.b16 %v1353
      %v1390 = vunpack.c.l.b16 %v1354
      %v1391 = vunpack.c.l.b16 %v1355
      %v1392 = vunpack.c.l.b16 %v1356
      %v1393 = vunpack.c.l.b16 %v1357
      %v1394 = vunpack.c.l.b16 %v1358
      %v1395 = vunpack.c.l.b16 %v1359
      %v1396 = vunpack.c.l.b16 %v1360
      %v1397 = vpack.c.b16 %v1382, %v1381
      %v1398 = vpack.c.b16 %v1384, %v1383
      %v1399 = vpack.c.b16 %v1386, %v1385
      %v1400 = vpack.c.b16 %v1388, %v1387
      %v1401 = vpack.c.b16 %v1390, %v1389
      %v1402 = vpack.c.b16 %v1392, %v1391
      %v1403 = vpack.c.b16 %v1394, %v1393
      %v1404 = vpack.c.b16 %v1396, %v1395
      %1413 = vmatpush.bf16.msra.mxu0 %v1404
      %1414 = vmatpush.bf16.msra.mxu0 %v1403
      %1415 = vmatpush.bf16.msra.mxu0 %v1402
      %1416 = vmatpush.bf16.msra.mxu0 %v1401
      %1417 = vmatpush.bf16.msra.mxu0 %v1400
      %1418 = vmatpush.bf16.msra.mxu0 %v1399
      %1419 = vmatpush.bf16.msra.mxu0 %v1398
      %1420 = vmatpush.bf16.msra.mxu0 %v1397
      %1421 = vmatmul.bf16.gmra.mxu0 %v1340
      %v1422 = vpop.f32.mrf.mxu0
      %v1423 = vadd.f32 %v1363, %v1422
      %v1424 = vpop.f32.mrf.mxu0
      %v1425 = vadd.f32 %v1363, %v1424
      %1426 = vmatmul.bf16.gmra.mxu0 %v1341
      %v1427 = vpop.f32.mrf.mxu0
      %v1428 = vadd.f32 %v1363, %v1427
      %v1429 = vpop.f32.mrf.mxu0
      %v1430 = vadd.f32 %v1363, %v1429
      %1431 = vmatmul.bf16.gmra.mxu0 %v1342
      %v1432 = vpop.f32.mrf.mxu0
      %v1433 = vadd.f32 %v1363, %v1432
      %v1434 = vpop.f32.mrf.mxu0
      %v1435 = vadd.f32 %v1363, %v1434
      %1436 = vmatmul.bf16.gmra.mxu0 %v1343
      %v1437 = vpop.f32.mrf.mxu0
      %v1438 = vadd.f32 %v1363, %v1437
      %v1439 = vpop.f32.mrf.mxu0
      %v1440 = vadd.f32 %v1363, %v1439
      %1441 = vmatmul.bf16.gmra.mxu0 %v1344
      %v1442 = vpop.f32.mrf.mxu0
      %v1443 = vadd.f32 %v1363, %v1442
      %v1444 = vpop.f32.mrf.mxu0
      %v1445 = vadd.f32 %v1363, %v1444
      %1446 = vdwg.mxu0
      %v1447 = vmax.f32 %v1423, 0.0
      %v1448 = vmax.f32 %v1425, 0.0
      %v1449 = vmax.f32 %v1428, 0.0
      %v1450 = vmax.f32 %v1430, 0.0
      %v1451 = vmax.f32 %v1433, 0.0
      %v1452 = vmax.f32 %v1435, 0.0
      %v1453 = vmax.f32 %v1438, 0.0
      %v1454 = vmax.f32 %v1440, 0.0
      %v1455 = vmax.f32 %v1443, 0.0
      %v1456 = vmax.f32 %v1445, 0.0
      %v1457 = vpack.c.bf16 %v1448, %v1447
      %v1458 = vpack.c.bf16 %v1450, %v1449
      %v1459 = vpack.c.bf16 %v1452, %v1451
      %v1460 = vpack.c.bf16 %v1454, %v1453
      %v1461 = vpack.c.bf16 %v1456, %v1455
      %v1462 = vld [vmem:[%s638] sm:$0xf]
      %v1463 = vld [vmem:[%s638 + $0x4] sm:$0xf]
      %v1464 = vld [vmem:[%s638 + $0x8] sm:$0xf]
      %v1465 = vld [vmem:[%s638 + $0xc] sm:$0xf]
      %v1466 = vld [vmem:[%s638 + $0x10] sm:$0xf]
      %v1467 = vld [vmem:[%s638 + $0x14] sm:$0xf]
      %v1468 = vld [vmem:[%s638 + $0x18] sm:$0xf]
      %v1469 = vld [vmem:[%s638 + $0x1c] sm:$0xf]
      %v1470 = vld [vmem:[%s642] sm:$0x1]
      %v1472 = vperm.slane %v1470, 0
      %v1482 = vunpack.c.l.b16 %v1462
      %v1483 = vunpack.c.l.b16 %v1463
      %v1484 = vunpack.c.l.b16 %v1464
      %v1485 = vunpack.c.l.b16 %v1465
      %v1486 = vunpack.c.l.b16 %v1466
      %v1487 = vunpack.c.l.b16 %v1467
      %v1488 = vunpack.c.l.b16 %v1468
      %v1489 = vunpack.c.l.b16 %v1469
      %v1490 = vpack.c.b16 %v1483, %v1482
      %v1491 = vpack.c.b16 %v1485, %v1484
      %v1492 = vpack.c.b16 %v1487, %v1486
      %v1493 = vpack.c.b16 %v1489, %v1488
      %vm1498 = vcmask 523264
      %v1500 = vsel %vm1498, %v1457, 0
      %v1503 = vsel %vm1498, %v1458, 0
      %v1506 = vsel %vm1498, %v1459, 0
      %v1509 = vsel %vm1498, %v1460, 0
      %v1512 = vsel %vm1498, %v1461, 0
      %1514 = vmatpush.bf16.msra.mxu0 0
      %1515 = vmatpush.bf16.msra.mxu0 0
      %1516 = vmatpush.bf16.msra.mxu0 0
      %1517 = vmatpush.bf16.msra.mxu0 0
      %1518 = vmatpush.bf16.msra.mxu0 %v1493
      %1519 = vmatpush.bf16.msra.mxu0 %v1492
      %1520 = vmatpush.bf16.msra.mxu0 %v1491
      %1521 = vmatpush.bf16.msra.mxu0 %v1490
      %1522 = vmatmul.bf16.gmra.mxu0 %v1500
      %v1523 = vpop.f32.mrf.mxu0
      %v1524 = vadd.f32 %v1472, %v1523
      %v1525 = vpop.f32.mrf.mxu0
      %v1526 = vadd.f32 %v1472, %v1525
      %1527 = vmatmul.bf16.gmra.mxu0 %v1503
      %v1528 = vpop.f32.mrf.mxu0
      %v1529 = vadd.f32 %v1472, %v1528
      %v1530 = vpop.f32.mrf.mxu0
      %v1531 = vadd.f32 %v1472, %v1530
      %1532 = vmatmul.bf16.gmra.mxu0 %v1506
      %v1533 = vpop.f32.mrf.mxu0
      %v1534 = vadd.f32 %v1472, %v1533
      %v1535 = vpop.f32.mrf.mxu0
      %v1536 = vadd.f32 %v1472, %v1535
      %1537 = vmatmul.bf16.gmra.mxu0 %v1509
      %v1538 = vpop.f32.mrf.mxu0
      %v1539 = vadd.f32 %v1472, %v1538
      %v1540 = vpop.f32.mrf.mxu0
      %v1541 = vadd.f32 %v1472, %v1540
      %1542 = vmatmul.bf16.gmra.mxu0 %v1512
      %v1543 = vpop.f32.mrf.mxu0
      %v1544 = vadd.f32 %v1472, %v1543
      %v1545 = vpop.f32.mrf.mxu0
      %v1546 = vadd.f32 %v1472, %v1545
      %1547 = vdwg.mxu0
      %v1548 = vadd.f32 %v1524, %v1316
      %v1549 = vadd.f32 %v1526, %v1318
      %v1550 = vadd.f32 %v1529, %v1321
      %v1551 = vadd.f32 %v1531, %v1323
      %v1552 = vadd.f32 %v1534, %v1326
      %v1553 = vadd.f32 %v1536, %v1328
      %v1554 = vadd.f32 %v1539, %v1331
      %v1555 = vadd.f32 %v1541, %v1333
      %v1556 = vadd.f32 %v1544, %v1336
      %v1557 = vadd.f32 %v1546, %v1338
      %v1558 = vpack.c.bf16 %v1549, %v1548
      %v1559 = vpack.c.bf16 %v1551, %v1550
      %v1560 = vpack.c.bf16 %v1553, %v1552
      %v1561 = vpack.c.bf16 %v1555, %v1554
      %v1562 = vpack.c.bf16 %v1557, %v1556
      %s1563 = scalar_lea.vmem %s629, 64
      %v1564 = vld [vmem:[%s1563] sm:$0xf]
      %v1565 = vld [vmem:[%s1563 + $0x4] sm:$0xf]
      %v1566 = vld [vmem:[%s1563 + $0x8] sm:$0xf]
      %v1567 = vld [vmem:[%s1563 + $0xc] sm:$0xf]
      %v1568 = vld [vmem:[%s1563 + $0x10] sm:$0xf]
      %v1569 = vld [vmem:[%s1563 + $0x14] sm:$0xf]
      %v1570 = vld [vmem:[%s1563 + $0x18] sm:$0xf]
      %v1571 = vld [vmem:[%s1563 + $0x1c] sm:$0xf]
      %v1572 = vld [vmem:[%s1563 + $0x20] sm:$0xf]
      %v1573 = vld [vmem:[%s1563 + $0x24] sm:$0xf]
      %v1574 = vld [vmem:[%s1563 + $0x28] sm:$0xf]
      %v1575 = vld [vmem:[%s1563 + $0x2c] sm:$0xf]
      %v1576 = vld [vmem:[%s1563 + $0x30] sm:$0xf]
      %v1577 = vld [vmem:[%s1563 + $0x34] sm:$0xf]
      %v1578 = vld [vmem:[%s1563 + $0x38] sm:$0xf]
      %v1579 = vld [vmem:[%s1563 + $0x3c] sm:$0xf]
      %s1580 = scalar_lea.vmem %s633, 1
      %v1581 = vld [vmem:[%s1580] sm:$0x1]
      %v1583 = vperm.slane %v1581, 0
      %v1601 = vunpack.c.l.b16 %v1564
      %v1602 = vunpack.c.l.b16 %v1565
      %v1603 = vunpack.c.l.b16 %v1566
      %v1604 = vunpack.c.l.b16 %v1567
      %v1605 = vunpack.c.l.b16 %v1568
      %v1606 = vunpack.c.l.b16 %v1569
      %v1607 = vunpack.c.l.b16 %v1570
      %v1608 = vunpack.c.l.b16 %v1571
      %v1609 = vunpack.c.l.b16 %v1572
      %v1610 = vunpack.c.l.b16 %v1573
      %v1611 = vunpack.c.l.b16 %v1574
      %v1612 = vunpack.c.l.b16 %v1575
      %v1613 = vunpack.c.l.b16 %v1576
      %v1614 = vunpack.c.l.b16 %v1577
      %v1615 = vunpack.c.l.b16 %v1578
      %v1616 = vunpack.c.l.b16 %v1579
      %v1617 = vpack.c.b16 %v1602, %v1601
      %v1618 = vpack.c.b16 %v1604, %v1603
      %v1619 = vpack.c.b16 %v1606, %v1605
      %v1620 = vpack.c.b16 %v1608, %v1607
      %v1621 = vpack.c.b16 %v1610, %v1609
      %v1622 = vpack.c.b16 %v1612, %v1611
      %v1623 = vpack.c.b16 %v1614, %v1613
      %v1624 = vpack.c.b16 %v1616, %v1615
      %1633 = vmatpush.bf16.msra.mxu0 %v1624
      %1634 = vmatpush.bf16.msra.mxu0 %v1623
      %1635 = vmatpush.bf16.msra.mxu0 %v1622
      %1636 = vmatpush.bf16.msra.mxu0 %v1621
      %1637 = vmatpush.bf16.msra.mxu0 %v1620
      %1638 = vmatpush.bf16.msra.mxu0 %v1619
      %1639 = vmatpush.bf16.msra.mxu0 %v1618
      %1640 = vmatpush.bf16.msra.mxu0 %v1617
      %1641 = vmatmul.bf16.gmra.mxu0 %v1558
      %v1642 = vpop.f32.mrf.mxu0
      %v1643 = vadd.f32 %v1583, %v1642
      %v1644 = vpop.f32.mrf.mxu0
      %v1645 = vadd.f32 %v1583, %v1644
      %1646 = vmatmul.bf16.gmra.mxu0 %v1559
      %v1647 = vpop.f32.mrf.mxu0
      %v1648 = vadd.f32 %v1583, %v1647
      %v1649 = vpop.f32.mrf.mxu0
      %v1650 = vadd.f32 %v1583, %v1649
      %1651 = vmatmul.bf16.gmra.mxu0 %v1560
      %v1652 = vpop.f32.mrf.mxu0
      %v1653 = vadd.f32 %v1583, %v1652
      %v1654 = vpop.f32.mrf.mxu0
      %v1655 = vadd.f32 %v1583, %v1654
      %1656 = vmatmul.bf16.gmra.mxu0 %v1561
      %v1657 = vpop.f32.mrf.mxu0
      %v1658 = vadd.f32 %v1583, %v1657
      %v1659 = vpop.f32.mrf.mxu0
      %v1660 = vadd.f32 %v1583, %v1659
      %1661 = vmatmul.bf16.gmra.mxu0 %v1562
      %v1662 = vpop.f32.mrf.mxu0
      %v1663 = vadd.f32 %v1583, %v1662
      %v1664 = vpop.f32.mrf.mxu0
      %v1665 = vadd.f32 %v1583, %v1664
      %1666 = vdwg.mxu0
      %v1667 = vmax.f32 %v1643, 0.0
      %v1668 = vmax.f32 %v1645, 0.0
      %v1669 = vmax.f32 %v1648, 0.0
      %v1670 = vmax.f32 %v1650, 0.0
      %v1671 = vmax.f32 %v1653, 0.0
      %v1672 = vmax.f32 %v1655, 0.0
      %v1673 = vmax.f32 %v1658, 0.0
      %v1674 = vmax.f32 %v1660, 0.0
      %v1675 = vmax.f32 %v1663, 0.0
      %v1676 = vmax.f32 %v1665, 0.0
      %v1677 = vpack.c.bf16 %v1668, %v1667
      %v1678 = vpack.c.bf16 %v1670, %v1669
      %v1679 = vpack.c.bf16 %v1672, %v1671
      %v1680 = vpack.c.bf16 %v1674, %v1673
      %v1681 = vpack.c.bf16 %v1676, %v1675
      %s1682 = scalar_lea.vmem %s638, 32
      %v1683 = vld [vmem:[%s1682] sm:$0xf]
      %v1684 = vld [vmem:[%s1682 + $0x4] sm:$0xf]
      %v1685 = vld [vmem:[%s1682 + $0x8] sm:$0xf]
      %v1686 = vld [vmem:[%s1682 + $0xc] sm:$0xf]
      %v1687 = vld [vmem:[%s1682 + $0x10] sm:$0xf]
      %v1688 = vld [vmem:[%s1682 + $0x14] sm:$0xf]
      %v1689 = vld [vmem:[%s1682 + $0x18] sm:$0xf]
      %v1690 = vld [vmem:[%s1682 + $0x1c] sm:$0xf]
      %s1691 = scalar_lea.vmem %s642, 1
      %v1692 = vld [vmem:[%s1691] sm:$0x1]
      %v1694 = vperm.slane %v1692, 0
      %v1704 = vunpack.c.l.b16 %v1683
      %v1705 = vunpack.c.l.b16 %v1684
      %v1706 = vunpack.c.l.b16 %v1685
      %v1707 = vunpack.c.l.b16 %v1686
      %v1708 = vunpack.c.l.b16 %v1687
      %v1709 = vunpack.c.l.b16 %v1688
      %v1710 = vunpack.c.l.b16 %v1689
      %v1711 = vunpack.c.l.b16 %v1690
      %v1712 = vpack.c.b16 %v1705, %v1704
      %v1713 = vpack.c.b16 %v1707, %v1706
      %v1714 = vpack.c.b16 %v1709, %v1708
      %v1715 = vpack.c.b16 %v1711, %v1710
      %v1721 = vsel %vm1498, %v1677, 0
      %v1724 = vsel %vm1498, %v1678, 0
      %v1727 = vsel %vm1498, %v1679, 0
      %v1730 = vsel %vm1498, %v1680, 0
      %v1733 = vsel %vm1498, %v1681, 0
      %1735 = vmatpush.bf16.msra.mxu0 0
      %1736 = vmatpush.bf16.msra.mxu0 0
      %1737 = vmatpush.bf16.msra.mxu0 0
      %1738 = vmatpush.bf16.msra.mxu0 0
      %1739 = vmatpush.bf16.msra.mxu0 %v1715
      %1740 = vmatpush.bf16.msra.mxu0 %v1714
      %1741 = vmatpush.bf16.msra.mxu0 %v1713
      %1742 = vmatpush.bf16.msra.mxu0 %v1712
      %1743 = vmatmul.bf16.gmra.mxu0 %v1721
      %v1744 = vpop.f32.mrf.mxu0
      %v1745 = vadd.f32 %v1694, %v1744
      %v1746 = vpop.f32.mrf.mxu0
      %v1747 = vadd.f32 %v1694, %v1746
      %1748 = vmatmul.bf16.gmra.mxu0 %v1724
      %v1749 = vpop.f32.mrf.mxu0
      %v1750 = vadd.f32 %v1694, %v1749
      %v1751 = vpop.f32.mrf.mxu0
      %v1752 = vadd.f32 %v1694, %v1751
      %1753 = vmatmul.bf16.gmra.mxu0 %v1727
      %v1754 = vpop.f32.mrf.mxu0
      %v1755 = vadd.f32 %v1694, %v1754
      %v1756 = vpop.f32.mrf.mxu0
      %v1757 = vadd.f32 %v1694, %v1756
      %1758 = vmatmul.bf16.gmra.mxu0 %v1730
      %v1759 = vpop.f32.mrf.mxu0
      %v1760 = vadd.f32 %v1694, %v1759
      %v1761 = vpop.f32.mrf.mxu0
      %v1762 = vadd.f32 %v1694, %v1761
      %1763 = vmatmul.bf16.gmra.mxu0 %v1733
      %v1764 = vpop.f32.mrf.mxu0
      %v1765 = vadd.f32 %v1694, %v1764
      %v1766 = vpop.f32.mrf.mxu0
      %v1767 = vadd.f32 %v1694, %v1766
      %1768 = vdwg.mxu0
      %v1769 = vadd.f32 %v1745, %v1548
      %v1770 = vadd.f32 %v1747, %v1549
      %v1771 = vadd.f32 %v1750, %v1550
      %v1772 = vadd.f32 %v1752, %v1551
      %v1773 = vadd.f32 %v1755, %v1552
      %v1774 = vadd.f32 %v1757, %v1553
      %v1775 = vadd.f32 %v1760, %v1554
      %v1776 = vadd.f32 %v1762, %v1555
      %v1777 = vadd.f32 %v1765, %v1556
      %v1778 = vadd.f32 %v1767, %v1557
      %v1779 = vmax.f32 %v1769, %v1773
      %v1780 = vmax.f32 %v1779, %v1770
      %v1781 = vmax.f32 %v1771, %v1772
      %v1782 = vmax.f32 %v1780, %v1781
      %v1783 = vrot.slane %v1782, 4
      %v1784 = vmax.f32 %v1782, %v1783
      %v1785 = vrot.slane %v1784, 2
      %v1786 = vmax.f32 %v1784, %v1785
      %v1787 = vrot.slane %v1786, 1
      %v1788 = vmax.f32 %v1786, %v1787
      %v1789 = vmax.f32 %v1774, %v1778
      %v1790 = vmax.f32 %v1789, %v1775
      %v1791 = vmax.f32 %v1776, %v1777
      %v1792 = vmax.f32 %v1790, %v1791
      %v1793 = vrot.slane %v1792, 4
      %v1794 = vmax.f32 %v1792, %v1793
      %v1795 = vrot.slane %v1794, 2
      %v1796 = vmax.f32 %v1794, %v1795
      %v1797 = vrot.slane %v1796, 1
      %v1798 = vmax.f32 %v1796, %v1797
      %vm1799 = vcmask 1040384
      %v1800 = vsel %vm1799, %v1788, %v1798
      %v1801 = vpack.c.bf16 %v1800, %v1800
      %v1802 = vld [vmem:[%s647] sm:$0xf]
      %v1803 = vld [vmem:[%s647 + $0x4] sm:$0xf]
      %v1804 = vld [vmem:[%s647 + $0x8] sm:$0xf]
      %v1805 = vld [vmem:[%s647 + $0xc] sm:$0xf]
      %v1806 = vld [vmem:[%s647 + $0x10] sm:$0xf]
      %v1807 = vld [vmem:[%s647 + $0x14] sm:$0xf]
      %v1808 = vld [vmem:[%s647 + $0x18] sm:$0xf]
      %v1809 = vld [vmem:[%s647 + $0x1c] sm:$0xf]
      %v1810 = vld [vmem:[%s647 + $0x20] sm:$0xf]
      %v1811 = vld [vmem:[%s647 + $0x24] sm:$0xf]
      %v1812 = vld [vmem:[%s647 + $0x28] sm:$0xf]
      %v1813 = vld [vmem:[%s647 + $0x2c] sm:$0xf]
      %v1814 = vld [vmem:[%s647 + $0x30] sm:$0xf]
      %v1815 = vld [vmem:[%s647 + $0x34] sm:$0xf]
      %v1816 = vld [vmem:[%s647 + $0x38] sm:$0xf]
      %v1817 = vld [vmem:[%s647 + $0x3c] sm:$0xf]
      %v1818 = vld [vmem:[%s650] sm:$0x1]
      %v1820 = vperm.slane %v1818, 0
      %v1838 = vunpack.c.l.b16 %v1802
      %v1839 = vunpack.c.l.b16 %v1803
      %v1840 = vunpack.c.l.b16 %v1804
      %v1841 = vunpack.c.l.b16 %v1805
      %v1842 = vunpack.c.l.b16 %v1806
      %v1843 = vunpack.c.l.b16 %v1807
      %v1844 = vunpack.c.l.b16 %v1808
      %v1845 = vunpack.c.l.b16 %v1809
      %v1846 = vunpack.c.l.b16 %v1810
      %v1847 = vunpack.c.l.b16 %v1811
      %v1848 = vunpack.c.l.b16 %v1812
      %v1849 = vunpack.c.l.b16 %v1813
      %v1850 = vunpack.c.l.b16 %v1814
      %v1851 = vunpack.c.l.b16 %v1815
      %v1852 = vunpack.c.l.b16 %v1816
      %v1853 = vunpack.c.l.b16 %v1817
      %v1854 = vpack.c.b16 %v1839, %v1838
      %v1855 = vpack.c.b16 %v1841, %v1840
      %v1856 = vpack.c.b16 %v1843, %v1842
      %v1857 = vpack.c.b16 %v1845, %v1844
      %v1858 = vpack.c.b16 %v1847, %v1846
      %v1859 = vpack.c.b16 %v1849, %v1848
      %v1860 = vpack.c.b16 %v1851, %v1850
      %v1861 = vpack.c.b16 %v1853, %v1852
      %1870 = vmatpush.bf16.msra.mxu0 %v1861
      %1871 = vmatpush.bf16.msra.mxu0 %v1860
      %1872 = vmatpush.bf16.msra.mxu0 %v1859
      %1873 = vmatpush.bf16.msra.mxu0 %v1858
      %1874 = vmatpush.bf16.msra.mxu0 %v1857
      %1875 = vmatpush.bf16.msra.mxu0 %v1856
      %1876 = vmatpush.bf16.msra.mxu0 %v1855
      %1877 = vmatpush.bf16.msra.mxu0 %v1854
      %1878 = vmatmul.bf16.gmra.mxu0 %v1801
      %v1879 = vpop.f32.mrf.mxu0
      %v1880 = vadd.f32 %v1820, %v1879
      %v1881 = vpop.f32.mrf.mxu0
      %1882 = vdwg.mxu0
      %vm1883 = vcmask 1024
      %1884 = vst.msk [vmem:[%s654] sm:$0x3] %vm1883, %v1880
      %p1885 = scmp.lt.s32.totalorder %s24, 1
      %s1886 = scalar_select %p1885, %s24, 1
      %s1887 = smul.addr %s1886, 2
      %s1888 = scalar_lea.vmem %s13, %s1887
      // Predicated region
      $region73: #{_lambda_.1} parent=71 // pred_check
        %p1889 = pneg %p380
      $region74: #{_lambda_.1} parent=71 // pred_check_branch
        %1891 = sbr.rel (%p1889) target = $region76
      $region75: #{_lambda_.1} parent=71 // pred_region
        _
      $region76: #{_lambda_.1} parent=71 // pred_fallthru
        _
    $region72: #{_lambda_.1} parent=5 // pred_fallthru
      _
    %p1892 = scmp.le.s32.totalorder 2, %s19
    // Predicated region
    $region77: #{_lambda_.1} parent=5 // pred_check
      %p1893 = pneg %p1892
    $region78: #{_lambda_.1} parent=5 // pred_check_branch
      %1895 = sbr.rel (%p1893) target = $region80
    $region79: #{_lambda_.1} parent=5 // pred_region
      %s1896 = ssub.s32 %s19, 2
      // Predicated region
      $region81: #{_lambda_.1} parent=79 // pred_check
        %p1897 = pneg %p386
      $region82: #{_lambda_.1} parent=79 // pred_check_branch
        %1899 = sbr.rel (%p1897) target = $region84
      $region83: #{_lambda_.1} parent=79 // pred_region
        %p1900 = scmp.lt.s32.totalorder %s25, 1
        %s1901 = scalar_select %p1900, %s25, 1
        %s1902 = smul.addr %s1901, 2
        %s1903 = scalar_lea.vmem %s13, %s1902
      $region84: #{_lambda_.1} parent=79 // pred_fallthru
        _
    $region80: #{_lambda_.1} parent=5 // pred_fallthru
      _
  $region6: #{_lambda_.1} parent=0 // loop_footer
    %s23 = sadd.s32 1, %s19
  $region7: #{_lambda_.1} parent=0 // loop_footer_branch
    %18 = sbr.rel target = $region3
  $region8: #{_lambda_.1} parent=0 // loop_exit
    _

</llo_original>
